<compile_context>
chip_gen: v7x
topology: tpu7x:2x2x1
jax: 0.10.0
libtpu: 0.0.40
codegen_flags: <defaults>
</compile_context>

<pallas_src>
import functools

import jax
import jax.numpy as jnp
from jax.experimental import pallas as pl
from jax.experimental.pallas import tpu as pltpu

_EPS = 1e-5
_LANE = 128
_SUBLANE = 8
_OUT_COLS = 8  # narrow, masked-store output width (only column 0 is live)


def _round_up(x, m):
    return (x + m - 1) // m * m


def _pad2d(a, rows, cols):
    return jnp.pad(a, ((0, rows - a.shape[0]), (0, cols - a.shape[1])))


def _vmem_limit_bytes():
    # Generation-aware: ~48 MB on v7x (64 MiB physical), ~96 MB on v5e/v6e.
    try:
        cap = pltpu.get_tpu_info().vmem_capacity_bytes
    except Exception:  # pragma: no cover - conservative fallback
        cap = 64 << 20
    return min(96 << 20, (cap * 3) // 4)


def _dot(a, b, dtype):
    # Optional bf16 MXU operands (v5e/v6e/v7x bf16-native); accumulation is f32.
    return jnp.dot(a.astype(dtype), b.astype(dtype),
                   preferred_element_type=jnp.float32)


def _col_sums(x):
    # Axis-0 reductions on the MXU (ones-row matmul) instead of sublane/XLU
    # reductions: returns (sum over rows, sum of squares over rows), each (1, N).
    ones = jnp.ones((_SUBLANE, x.shape[0]), jnp.float32)
    s = jnp.dot(ones, x, preferred_element_type=jnp.float32)[0:1]
    sq = jnp.dot(ones, x * x, preferred_element_type=jnp.float32)[0:1]
    return s, sq


# ---------------------------------------------------------------------------
# Fused single-tile kernel: fc1 + BN(stats+apply) + fc2 + fc3 in one call.
# ---------------------------------------------------------------------------
def _critic_fused_kernel(state_ref, action_ref, gb_ref, w1_ref,
                         w2h_ref, w2a_ref, b2_ref, w3_ref, b3_ref,
                         out_ref, *, inv_n, matmul_dtype):
    # fc1 in f32 (protects BN statistics). No bias: cancelled exactly by the
    # BN mean subtraction, and zero-padded batch rows then contribute 0.
    x1 = jnp.dot(state_ref[...], w1_ref[...], preferred_element_type=jnp.float32)
    s, sq = _col_sums(x1)
    mean = s * inv_n
    var = jnp.maximum(sq * inv_n - mean * mean, 0.0)
    inv_std = jax.lax.rsqrt(var + _EPS)
    scale = gb_ref[0:1, :] * inv_std          # gamma * inv_std
    shift = gb_ref[1:2, :] - mean * scale     # beta - mean * scale
    x = jnp.maximum(x1 * scale + shift, 0.0)
    # fc2 over cat([x, action]) via split weights; bf16 MXU, f32 accumulation.
    h = (_dot(x, w2h_ref[...], matmul_dtype)
         + _dot(action_ref[...], w2a_ref[...], matmul_dtype)
         + b2_ref[...])
    h = jnp.maximum(h, 0.0)
    out_ref[...] = (_dot(h, w3_ref[...], matmul_dtype)
                    + b3_ref[...]).astype(out_ref.dtype)


# ---------------------------------------------------------------------------
# Multi-tile pass 1: per-tile partial (sum, sumsq) of fc1 features.
# No cross-tile accumulation -> "parallel" grid (both TCs on v7x).
# ---------------------------------------------------------------------------
def _bn_partials_kernel(state_ref, w1_ref, out_ref):
    x1 = jnp.dot(state_ref[...], w1_ref[...], preferred_element_type=jnp.float32)
    s, sq = _col_sums(x1)
    out_ref[0, :, :] = jnp.concatenate([s, sq], axis=0)


# ---------------------------------------------------------------------------
# Multi-tile pass 2: fc1 (recomputed) + BN FMA + relu + fc2 + relu + fc3.
# ---------------------------------------------------------------------------
def _critic_apply_kernel(state_ref, action_ref, ss_ref, w1_ref,
                         w2h_ref, w2a_ref, b2_ref, w3_ref, b3_ref,
                         out_ref, *, matmul_dtype):
    # fc1 in f32 so the recomputation matches the pass-1 statistics exactly.
    x1 = jnp.dot(state_ref[...], w1_ref[...], preferred_element_type=jnp.float32)
    x = jnp.maximum(x1 * ss_ref[0:1, :] + ss_ref[1:2, :], 0.0)
    h = (_dot(x, w2h_ref[...], matmul_dtype)
         + _dot(action_ref[...], w2a_ref[...], matmul_dtype)
         + b2_ref[...])
    h = jnp.maximum(h, 0.0)
    out_ref[...] = (_dot(h, w3_ref[...], matmul_dtype)
                    + b3_ref[...]).astype(out_ref.dtype)


# ---------------------------------------------------------------------------
# Wrapper
# ---------------------------------------------------------------------------
def critic_forward(state, action, kparams, *, matmul_dtype=jnp.bfloat16,
                   tile_m=2048):
    """state: (B, state_size), action: (B, action_size) -> (B, 1) f32."""
    B, S = state.shape
    A = action.shape[1]
    F1p = kparams["w1"].shape[1]
    F2p = kparams["w2_h"].shape[1]
    OC = kparams["w3"].shape[1]

    # Balanced tiling: avoid a nearly-empty last tile for awkward B.
    if B <= tile_m:
        n_tiles = 1
        tm = _round_up(B, _SUBLANE)
    else:
        n_tiles = -(-B // tile_m)
        tm = _round_up(-(-B // n_tiles), _SUBLANE)
    b_pad = n_tiles * tm
    if b_pad != B:
        # Exact: padded rows yield all-zero fc1 features (no bias in-kernel)
        # and the statistics divisor is the true batch size B.
        state = jnp.pad(state, ((0, b_pad - B), (0, 0)))
        action = jnp.pad(action, ((0, b_pad - B), (0, 0)))

    vmem_limit = _vmem_limit_bytes()
    const = lambda i: (0, 0)
    row = lambda i: (i, 0)

    weight_bytes = 4 * (S * F1p + 2 * F1p + F1p * F2p + A * F2p + F2p
                        + F2p * OC + OC)
    io_bytes = 4 * b_pad * (S + A + OC)
    fc1_flops = 2 * b_pad * S * F1p
    stat_flops = 4 * _SUBLANE * b_pad * F1p
    fc23_flops = 2 * b_pad * (F1p * F2p + A * F2p + F2p * OC)

    weight_specs = [
        pl.BlockSpec((S, F1p), const),      # w1
        pl.BlockSpec((F1p, F2p), const),    # w2 (hidden part)
        pl.BlockSpec((A, F2p), const),      # w2 (action part)
        pl.BlockSpec((1, F2p), const),      # b2
        pl.BlockSpec((F2p, OC), const),     # w3 (padded to OC cols)
        pl.BlockSpec((1, OC), const),       # b3
    ]
    weights = (kparams["w1"], kparams["w2_h"], kparams["w2_a"],
               kparams["b2"], kparams["w3"], kparams["b3"])

    if n_tiles == 1:
        # Fused fast path: one kernel, fc1 computed once, no stats round trip.
        q_pad = pl.pallas_call(
            functools.partial(_critic_fused_kernel, inv_n=1.0 / B,
                              matmul_dtype=matmul_dtype),
            out_shape=jax.ShapeDtypeStruct((b_pad, OC), jnp.float32),
            grid=(1,),
            in_specs=[pl.BlockSpec((tm, S), const),
                      pl.BlockSpec((tm, A), const),
                      pl.BlockSpec((2, F1p), const)] + weight_specs,
            out_specs=pl.BlockSpec((tm, OC), const),
            compiler_params=pltpu.CompilerParams(
                dimension_semantics=("arbitrary",),
                vmem_limit_bytes=vmem_limit),
            cost_estimate=pl.CostEstimate(
                flops=fc1_flops + stat_flops + fc23_flops,
                transcendentals=F1p,
                bytes_accessed=io_bytes + weight_bytes),
        )(state, action, kparams["gamma_beta"], *weights)
        return q_pad[:B, 0:1]

    # ---------------- Pass 1: per-tile BN partial sums (parallel) -----------
    partials = pl.pallas_call(
        _bn_partials_kernel,
        out_shape=jax.ShapeDtypeStruct((n_tiles, 2, F1p), jnp.float32),
        grid=(n_tiles,),
        in_specs=[pl.BlockSpec((tm, S), row),
                  pl.BlockSpec((S, F1p), const)],
        out_specs=pl.BlockSpec((1, 2, F1p), lambda i: (i, 0, 0)),
        compiler_params=pltpu.CompilerParams(
            dimension_semantics=("parallel",), vmem_limit_bytes=vmem_limit),
        cost_estimate=pl.CostEstimate(
            flops=fc1_flops + stat_flops, transcendentals=0,
            bytes_accessed=4 * (b_pad * S + S * F1p + n_tiles * 2 * F1p)),
    )(state, kparams["w1"])

    # Tiny cross-tile reduction + gamma/beta fold in plain JAX (a few KB).
    sums = jnp.sum(partials, axis=0)                         # (2, F1p)
    mean = sums[0:1] / B
    var = jnp.maximum(sums[1:2] / B - mean * mean, 0.0)
    inv_std = jax.lax.rsqrt(var + _EPS)
    scale = kparams["gamma_beta"][0:1] * inv_std
    shift = kparams["gamma_beta"][1:2] - mean * scale
    scale_shift = jnp.concatenate([scale, shift], axis=0)    # (2, F1p)

    # ---------------- Pass 2: apply (parallel batch tiles) ------------------
    q_pad = pl.pallas_call(
        functools.partial(_critic_apply_kernel, matmul_dtype=matmul_dtype),
        out_shape=jax.ShapeDtypeStruct((b_pad, OC), jnp.float32),
        grid=(n_tiles,),
        in_specs=[pl.BlockSpec((tm, S), row),
                  pl.BlockSpec((tm, A), row),
                  pl.BlockSpec((2, F1p), const)] + weight_specs,
        out_specs=pl.BlockSpec((tm, OC), row),
        compiler_params=pltpu.CompilerParams(
            dimension_semantics=("parallel",), vmem_limit_bytes=vmem_limit),
        cost_estimate=pl.CostEstimate(
            flops=fc1_flops + fc23_flops, transcendentals=0,
            bytes_accessed=io_bytes + weight_bytes),
    )(state, action, scale_shift, *weights)

    return q_pad[:B, 0:1]


# ---------------------------------------------------------------------------
# Parameter init (mimics PyTorch default Linear init) and kernel-side prep.
# ---------------------------------------------------------------------------
def init_params(key, state_size, action_size, fc1_units=400, fc2_units=300):
    ks = jax.random.split(key, 6)

    def lin(kw, kb, fan_in, fan_out):
        bound = 1.0 / (fan_in ** 0.5)
        w = jax.random.uniform(kw, (fan_in, fan_out), jnp.float32, -bound, bound)
        b = jax.random.uniform(kb, (1, fan_out), jnp.float32, -bound, bound)
        return w, b

    w1, b1 = lin(ks[0], ks[1], state_size, fc1_units)
    w2, b2 = lin(ks[2], ks[3], fc1_units + action_size, fc2_units)
    w3, b3 = lin(ks[4], ks[5], fc2_units, 1)
    return {"w1": w1, "b1": b1,
            "gamma": jnp.ones((1, fc1_units), jnp.float32),
            "beta": jnp.zeros((1, fc1_units), jnp.float32),
            "w2": w2, "b2": b2, "w3": w3, "b3": b3}


def prepare_params(params):
    """Pad feature dims to 128-multiples, split fc2 weight (concat fold),
    drop the fc1 bias (cancelled by BN), pack gamma/beta, widen fc3 to 8."""
    F1 = params["gamma"].shape[1]
    F1p = _round_up(F1, _LANE)
    F2p = _round_up(params["w2"].shape[1], _LANE)
    w2_h = params["w2"][:F1, :]
    w2_a = params["w2"][F1:, :]
    gamma_beta = _pad2d(
        jnp.concatenate([params["gamma"], params["beta"]], axis=0), 2, F1p)
    # Correctness of padded fc1 columns relies on the padded gamma being zero
    # (so scale = gamma * 1/sqrt(eps) = 0 there); _pad2d guarantees this.
    return {
        "w1": _pad2d(params["w1"], params["w1"].shape[0], F1p),
        "gamma_beta": gamma_beta,
        "w2_h": _pad2d(w2_h, F1p, F2p),
        "w2_a": _pad2d(w2_a, w2_a.shape[0], F2p),
        "b2": _pad2d(params["b2"], 1, F2p),
        "w3": _pad2d(params["w3"], F2p, _OUT_COLS),
        "b3": _pad2d(params["b3"], 1, _OUT_COLS),
    }


def critic_reference(state, action, params):
    """Pure-JAX reference of the PyTorch forward (train-mode BN)."""
    x = state @ params["w1"] + params["b1"]
    mean = jnp.mean(x, axis=0, keepdims=True)
    var = jnp.mean((x - mean) ** 2, axis=0, keepdims=True)
    x = params["gamma"] * (x - mean) * jax.lax.rsqrt(var + _EPS) + params["beta"]
    x = jnp.maximum(x, 0.0)
    xcat = jnp.concatenate([x, action], axis=1)
    h = jnp.maximum(xcat @ params["w2"] + params["b2"], 0.0)
    return h @ params["w3"] + params["b3"]


if __name__ == "__main__":
    STATE_SIZE, ACTION_SIZE = 32, 8
    key = jax.random.PRNGKey(0)
    k_s1, k_a1, k_s2, k_a2, k_params = jax.random.split(key, 5)

    params = init_params(k_params, STATE_SIZE, ACTION_SIZE)
    kparams = prepare_params(params)

    # --- Small batch: fused single-tile fast path --------------------------
    B = 8
    state = jax.random.normal(k_s1, (B, STATE_SIZE), jnp.float32)
    action = jax.random.normal(k_a1, (B, ACTION_SIZE), jnp.float32)
    q_ref = critic_reference(state, action, params)

    q_bf16 = jax.block_until_ready(critic_forward(state, action, kparams))
    assert q_bf16.shape == (B, 1)
    assert jnp.allclose(q_bf16, q_ref, atol=5e-2, rtol=5e-2), \
        float(jnp.max(jnp.abs(q_bf16 - q_ref)))

    q_f32 = jax.block_until_ready(
        critic_forward(state, action, kparams, matmul_dtype=jnp.float32))
    assert jnp.allclose(q_f32, q_ref, atol=1e-3, rtol=1e-3), \
        float(jnp.max(jnp.abs(q_f32 - q_ref)))

    # --- Odd batch with a small tile: exercises the two-pass tiled path ----
    B2 = 40
    state2 = jax.random.normal(k_s2, (B2, STATE_SIZE), jnp.float32)
    action2 = jax.random.normal(k_a2, (B2, ACTION_SIZE), jnp.float32)
    q2 = jax.block_until_ready(
        critic_forward(state2, action2, kparams,
                       matmul_dtype=jnp.float32, tile_m=16))
    q2_ref = critic_reference(state2, action2, params)
    assert q2.shape == (B2, 1)
    assert jnp.allclose(q2, q2_ref, atol=1e-3, rtol=1e-3), \
        float(jnp.max(jnp.abs(q2 - q2_ref)))

    print("KERNEL_OK")
</pallas_src>

<mosaic_0001>
module attributes {stable_mosaic.version = 11 : i64} {
  func.func @_critic_fused_kernel(%arg0: i32, %arg1: memref<8x32xf32, #tpu.memory_space<vmem>>, %arg2: memref<8x8xf32, #tpu.memory_space<vmem>>, %arg3: memref<2x512xf32, #tpu.memory_space<vmem>>, %arg4: memref<32x512xf32, #tpu.memory_space<vmem>>, %arg5: memref<512x384xf32, #tpu.memory_space<vmem>>, %arg6: memref<8x384xf32, #tpu.memory_space<vmem>>, %arg7: memref<1x384xf32, #tpu.memory_space<vmem>>, %arg8: memref<384x8xf32, #tpu.memory_space<vmem>>, %arg9: memref<1x8xf32, #tpu.memory_space<vmem>>, %arg10: memref<8x8xf32, #tpu.memory_space<vmem>>) attributes {dimension_semantics = [#tpu.dimension_semantics<arbitrary>], iteration_bounds = array<i64: 1>, scalar_prefetch = 0 : i64, scratch_operands = 0 : i64, tpu.core_type = #tpu.core_type<tc>, window_params = [{pipeline_mode = #tpu.pipeline_mode<synchronous>, transform_indices = @transform_0, window_bounds = array<i64: 8, 32>}, {pipeline_mode = #tpu.pipeline_mode<synchronous>, transform_indices = @transform_1, window_bounds = array<i64: 8, 8>}, {pipeline_mode = #tpu.pipeline_mode<synchronous>, transform_indices = @transform_2, window_bounds = array<i64: 2, 512>}, {pipeline_mode = #tpu.pipeline_mode<synchronous>, transform_indices = @transform_3, window_bounds = array<i64: 32, 512>}, {pipeline_mode = #tpu.pipeline_mode<synchronous>, transform_indices = @transform_4, window_bounds = array<i64: 512, 384>}, {pipeline_mode = #tpu.pipeline_mode<synchronous>, transform_indices = @transform_5, window_bounds = array<i64: 8, 384>}, {pipeline_mode = #tpu.pipeline_mode<synchronous>, transform_indices = @transform_6, window_bounds = array<i64: 1, 384>}, {pipeline_mode = #tpu.pipeline_mode<synchronous>, transform_indices = @transform_7, window_bounds = array<i64: 384, 8>}, {pipeline_mode = #tpu.pipeline_mode<synchronous>, transform_indices = @transform_8, window_bounds = array<i64: 1, 8>}, {pipeline_mode = #tpu.pipeline_mode<synchronous>, transform_indices = @transform_9, window_bounds = array<i64: 8, 8>}]} {
    %c0 = arith.constant 0 : index
    %c0_0 = arith.constant 0 : index
    %0 = vector.load %arg1[%c0, %c0_0] : memref<8x32xf32, #tpu.memory_space<vmem>>, vector<8x32xf32>
    %c0_1 = arith.constant 0 : index
    %c0_2 = arith.constant 0 : index
    %1 = vector.load %arg4[%c0_1, %c0_2] : memref<32x512xf32, #tpu.memory_space<vmem>>, vector<32x512xf32>
    %cst = arith.constant dense<0.000000e+00> : vector<8x512xf32>
    %2 = tpu.matmul %0, %1, %cst {dimension_numbers = #tpu.dot_dimension_numbers<[1], [0], [0], [1], [0, 0, 1, 1], [], []>} : vector<8x32xf32>, vector<32x512xf32>, vector<8x512xf32> -> vector<8x512xf32>
    %cst_3 = arith.constant 1.000000e+00 : f32
    %3 = vector.broadcast %cst_3 : f32 to vector<8x8xf32>
    %cst_4 = arith.constant dense<0.000000e+00> : vector<8x512xf32>
    %4 = tpu.matmul %3, %2, %cst_4 {dimension_numbers = #tpu.dot_dimension_numbers<[1], [0], [0], [1], [0, 0, 1, 1], [], []>} : vector<8x8xf32>, vector<8x512xf32>, vector<8x512xf32> -> vector<8x512xf32>
    %5 = vector.extract_strided_slice %4 {offsets = [0, 0], sizes = [1, 512], strides = [1, 1]} : vector<8x512xf32> to vector<1x512xf32>
    %6 = arith.mulf %2, %2 : vector<8x512xf32>
    %cst_5 = arith.constant dense<0.000000e+00> : vector<8x512xf32>
    %7 = tpu.matmul %3, %6, %cst_5 {dimension_numbers = #tpu.dot_dimension_numbers<[1], [0], [0], [1], [0, 0, 1, 1], [], []>} : vector<8x8xf32>, vector<8x512xf32>, vector<8x512xf32> -> vector<8x512xf32>
    %8 = vector.extract_strided_slice %7 {offsets = [0, 0], sizes = [1, 512], strides = [1, 1]} : vector<8x512xf32> to vector<1x512xf32>
    %cst_6 = arith.constant 1.250000e-01 : f32
    %9 = vector.broadcast %cst_6 : f32 to vector<1x512xf32>
    %10 = arith.mulf %5, %9 : vector<1x512xf32>
    %cst_7 = arith.constant 1.250000e-01 : f32
    %11 = vector.broadcast %cst_7 : f32 to vector<1x512xf32>
    %12 = arith.mulf %8, %11 : vector<1x512xf32>
    %13 = arith.mulf %10, %10 : vector<1x512xf32>
    %14 = arith.subf %12, %13 : vector<1x512xf32>
    %cst_8 = arith.constant 0.000000e+00 : f32
    %15 = vector.broadcast %cst_8 : f32 to vector<1x512xf32>
    %16 = arith.maximumf %14, %15 : vector<1x512xf32>
    %cst_9 = arith.constant 9.99999974E-6 : f32
    %17 = vector.broadcast %cst_9 : f32 to vector<1x512xf32>
    %18 = arith.addf %16, %17 : vector<1x512xf32>
    %19 = math.rsqrt %18 : vector<1x512xf32>
    %c0_10 = arith.constant 0 : index
    %c0_11 = arith.constant 0 : index
    %20 = vector.load %arg3[%c0_10, %c0_11] : memref<2x512xf32, #tpu.memory_space<vmem>>, vector<1x512xf32>
    %21 = arith.mulf %20, %19 : vector<1x512xf32>
    %c1 = arith.constant 1 : index
    %c0_12 = arith.constant 0 : index
    %22 = vector.load %arg3[%c1, %c0_12] : memref<2x512xf32, #tpu.memory_space<vmem>>, vector<1x512xf32>
    %23 = arith.mulf %10, %21 : vector<1x512xf32>
    %24 = arith.subf %22, %23 : vector<1x512xf32>
    %25 = vector.broadcast %21 : vector<1x512xf32> to vector<8x512xf32>
    %26 = arith.mulf %2, %25 : vector<8x512xf32>
    %27 = vector.broadcast %24 : vector<1x512xf32> to vector<8x512xf32>
    %28 = arith.addf %26, %27 : vector<8x512xf32>
    %cst_13 = arith.constant 0.000000e+00 : f32
    %29 = vector.broadcast %cst_13 : f32 to vector<8x512xf32>
    %30 = arith.maximumf %28, %29 : vector<8x512xf32>
    %c0_14 = arith.constant 0 : index
    %c0_15 = arith.constant 0 : index
    %31 = vector.load %arg5[%c0_14, %c0_15] : memref<512x384xf32, #tpu.memory_space<vmem>>, vector<512x384xf32>
    %32 = arith.truncf %30 : vector<8x512xf32> to vector<8x512xbf16>
    %33 = arith.truncf %31 : vector<512x384xf32> to vector<512x384xbf16>
    %cst_16 = arith.constant dense<0.000000e+00> : vector<8x384xf32>
    %34 = tpu.matmul %32, %33, %cst_16 {dimension_numbers = #tpu.dot_dimension_numbers<[1], [0], [0], [1], [0, 0, 1, 1], [], []>} : vector<8x512xbf16>, vector<512x384xbf16>, vector<8x384xf32> -> vector<8x384xf32>
    %c0_17 = arith.constant 0 : index
    %c0_18 = arith.constant 0 : index
    %35 = vector.load %arg2[%c0_17, %c0_18] : memref<8x8xf32, #tpu.memory_space<vmem>>, vector<8x8xf32>
    %c0_19 = arith.constant 0 : index
    %c0_20 = arith.constant 0 : index
    %36 = vector.load %arg6[%c0_19, %c0_20] : memref<8x384xf32, #tpu.memory_space<vmem>>, vector<8x384xf32>
    %37 = arith.truncf %35 : vector<8x8xf32> to vector<8x8xbf16>
    %38 = arith.truncf %36 : vector<8x384xf32> to vector<8x384xbf16>
    %cst_21 = arith.constant dense<0.000000e+00> : vector<8x384xf32>
    %39 = tpu.matmul %37, %38, %cst_21 {dimension_numbers = #tpu.dot_dimension_numbers<[1], [0], [0], [1], [0, 0, 1, 1], [], []>} : vector<8x8xbf16>, vector<8x384xbf16>, vector<8x384xf32> -> vector<8x384xf32>
    %40 = arith.addf %34, %39 : vector<8x384xf32>
    %c0_22 = arith.constant 0 : index
    %c0_23 = arith.constant 0 : index
    %41 = vector.load %arg7[%c0_22, %c0_23] : memref<1x384xf32, #tpu.memory_space<vmem>>, vector<1x384xf32>
    %42 = vector.broadcast %41 : vector<1x384xf32> to vector<8x384xf32>
    %43 = arith.addf %40, %42 : vector<8x384xf32>
    %cst_24 = arith.constant 0.000000e+00 : f32
    %44 = vector.broadcast %cst_24 : f32 to vector<8x384xf32>
    %45 = arith.maximumf %43, %44 : vector<8x384xf32>
    %c0_25 = arith.constant 0 : index
    %c0_26 = arith.constant 0 : index
    %46 = vector.load %arg8[%c0_25, %c0_26] : memref<384x8xf32, #tpu.memory_space<vmem>>, vector<384x8xf32>
    %47 = arith.truncf %45 : vector<8x384xf32> to vector<8x384xbf16>
    %48 = arith.truncf %46 : vector<384x8xf32> to vector<384x8xbf16>
    %cst_27 = arith.constant dense<0.000000e+00> : vector<8x8xf32>
    %49 = tpu.matmul %47, %48, %cst_27 {dimension_numbers = #tpu.dot_dimension_numbers<[1], [0], [0], [1], [0, 0, 1, 1], [], []>} : vector<8x384xbf16>, vector<384x8xbf16>, vector<8x8xf32> -> vector<8x8xf32>
    %c0_28 = arith.constant 0 : index
    %c0_29 = arith.constant 0 : index
    %50 = vector.load %arg9[%c0_28, %c0_29] : memref<1x8xf32, #tpu.memory_space<vmem>>, vector<1x8xf32>
    %51 = vector.broadcast %50 : vector<1x8xf32> to vector<8x8xf32>
    %52 = arith.addf %49, %51 : vector<8x8xf32>
    %c0_30 = arith.constant 0 : index
    %c0_31 = arith.constant 0 : index
    %53 = vector.load %arg10[%c0_30, %c0_31] : memref<8x8xf32, #tpu.memory_space<vmem>>, vector<8x8xf32>
    tpu.vector_store %arg10[%c0_30, %c0_31], %52 {strides = array<i32>} : memref<8x8xf32, #tpu.memory_space<vmem>>, vector<8x8xf32>,
    return
  }
  func.func @transform_0(%arg0: i32) -> (i32, i32) {
    %c0_i32 = arith.constant 0 : i32
    %c0_i32_0 = arith.constant 0 : i32
    %c0_i32_1 = arith.constant 0 : i32
    return %c0_i32, %c0_i32_0 : i32, i32
  }
  func.func @transform_1(%arg0: i32) -> (i32, i32) {
    %c0_i32 = arith.constant 0 : i32
    %c0_i32_0 = arith.constant 0 : i32
    %c0_i32_1 = arith.constant 0 : i32
    return %c0_i32, %c0_i32_0 : i32, i32
  }
  func.func @transform_2(%arg0: i32) -> (i32, i32) {
    %c0_i32 = arith.constant 0 : i32
    %c0_i32_0 = arith.constant 0 : i32
    %c0_i32_1 = arith.constant 0 : i32
    return %c0_i32, %c0_i32_0 : i32, i32
  }
  func.func @transform_3(%arg0: i32) -> (i32, i32) {
    %c0_i32 = arith.constant 0 : i32
    %c0_i32_0 = arith.constant 0 : i32
    %c0_i32_1 = arith.constant 0 : i32
    return %c0_i32, %c0_i32_0 : i32, i32
  }
  func.func @transform_4(%arg0: i32) -> (i32, i32) {
    %c0_i32 = arith.constant 0 : i32
    %c0_i32_0 = arith.constant 0 : i32
    %c0_i32_1 = arith.constant 0 : i32
    return %c0_i32, %c0_i32_0 : i32, i32
  }
  func.func @transform_5(%arg0: i32) -> (i32, i32) {
    %c0_i32 = arith.constant 0 : i32
    %c0_i32_0 = arith.constant 0 : i32
    %c0_i32_1 = arith.constant 0 : i32
    return %c0_i32, %c0_i32_0 : i32, i32
  }
  func.func @transform_6(%arg0: i32) -> (i32, i32) {
    %c0_i32 = arith.constant 0 : i32
    %c0_i32_0 = arith.constant 0 : i32
    %c0_i32_1 = arith.constant 0 : i32
    return %c0_i32, %c0_i32_0 : i32, i32
  }
  func.func @transform_7(%arg0: i32) -> (i32, i32) {
    %c0_i32 = arith.constant 0 : i32
    %c0_i32_0 = arith.constant 0 : i32
    %c0_i32_1 = arith.constant 0 : i32
    return %c0_i32, %c0_i32_0 : i32, i32
  }
  func.func @transform_8(%arg0: i32) -> (i32, i32) {
    %c0_i32 = arith.constant 0 : i32
    %c0_i32_0 = arith.constant 0 : i32
    %c0_i32_1 = arith.constant 0 : i32
    return %c0_i32, %c0_i32_0 : i32, i32
  }
  func.func @transform_9(%arg0: i32) -> (i32, i32) {
    %c0_i32 = arith.constant 0 : i32
    %c0_i32_0 = arith.constant 0 : i32
    %c0_i32_1 = arith.constant 0 : i32
    return %c0_i32, %c0_i32_0 : i32, i32
  }
}

</mosaic_0001>

<llo_original>
// kernel: tpu_custom_call.1
$region0: #{tpu_custom_call.1}
  #allocation0 [shape = 'u32[]', space=smem, size = 0x4, offset = 0x4, fixed_abs, tag = 'smem constant byte address 0x4 - core index']
  #allocation1 [shape = 'u32[144,128]{1,0:T(1,128)}', space=vmem, size = 0x12000, scoped, tag = 'internal scratch']
  %s0 = inlined_call_operand.vmem [shape: f32[8,32], index: 0, kind: input, shape index: {}]
  %s1 = inlined_call_operand.vmem [shape: f32[8,8], index: 1, kind: input, shape index: {}]
  %s2 = inlined_call_operand.vmem [shape: f32[2,512], index: 2, kind: input, shape index: {}]
  %s3 = inlined_call_operand.vmem [shape: f32[32,512], index: 3, kind: input, shape index: {}]
  %s4 = inlined_call_operand.hbm [shape: f32[512,384], index: 4, kind: input, shape index: {}]
  %s5 = inlined_call_operand.vmem [shape: f32[8,384], index: 5, kind: input, shape index: {}]
  %s6 = inlined_call_operand.vmem [shape: f32[1,384], index: 6, kind: input, shape index: {}]
  %s7 = inlined_call_operand.vmem [shape: f32[384,8], index: 7, kind: input, shape index: {}]
  %s8 = inlined_call_operand.vmem [shape: f32[1,8], index: 8, kind: input, shape index: {}]
  %s9 = inlined_call_operand.hbm [shape: f32[8,8], index: 9, kind: output, shape index: {}]
  %s10 = sld [smem:[#allocation0]]
  $region50: #{tpu_custom_call.1} parent=0
    _
  %s12 = ssub.s32 1, %s10
  %s13 = scalar_select 0, %s12, %s10
  $region1: #{tpu_custom_call.1} parent=0
    #allocation2 [shape = 'u8[786432]{0}', space=vmem, size = 0xc0000, scoped, tag = 'input window, operand 4, single buffered']
    #allocation3 [shape = 's32[1]{0}', space=sflag, size = 0x4, scoped, tag = 'scoped memory for tpu_custom_call.1']
    #allocation4 [shape = 's32[1]{0}', space=sflag, size = 0x4, scoped, tag = 'scoped memory for tpu_custom_call.1']
    #allocation5 [shape = 'u8[4096]{0}', space=vmem, size = 0x1000, scoped, tag = 'output window, operand 0, single buffered']
    %14 = vsyncpa [#allocation3], 0
    %15 = vsyncpa [#allocation4], 0
    // Predicated region
    $region2: #{tpu_custom_call.1} parent=1 // pred_check
      _
    $region3: #{tpu_custom_call.1} parent=1 // pred_check_branch
      %17 = sbr.rel (0) target = $region5
    $region4: #{tpu_custom_call.1} parent=1 // pred_region
      _
    $region5: #{tpu_custom_call.1} parent=1 // pred_fallthru
      _
    // Predicated region
    $region6: #{tpu_custom_call.1} parent=1 // pred_check
      _
    $region7: #{tpu_custom_call.1} parent=1 // pred_check_branch
      %19 = sbr.rel (0) target = $region9
    $region8: #{tpu_custom_call.1} parent=1 // pred_region
      _
    $region9: #{tpu_custom_call.1} parent=1 // pred_fallthru
      _
    // Predicated region
    $region10: #{tpu_custom_call.1} parent=1 // pred_check
      _
    $region11: #{tpu_custom_call.1} parent=1 // pred_check_branch
      %21 = sbr.rel (0) target = $region13
    $region12: #{tpu_custom_call.1} parent=1 // pred_region
      _
    $region13: #{tpu_custom_call.1} parent=1 // pred_fallthru
      _
    // Predicated region
    $region14: #{tpu_custom_call.1} parent=1 // pred_check
      _
    $region15: #{tpu_custom_call.1} parent=1 // pred_check_branch
      %23 = sbr.rel (0) target = $region17
    $region16: #{tpu_custom_call.1} parent=1 // pred_region
      _
    $region17: #{tpu_custom_call.1} parent=1 // pred_fallthru
      _
    // Predicated region
    $region18: #{tpu_custom_call.1} parent=1 // pred_check
      _
    $region19: #{tpu_custom_call.1} parent=1 // pred_check_branch
      %25 = sbr.rel (0) target = $region21
    $region20: #{tpu_custom_call.1} parent=1 // pred_region
      %s27 = ssub.s32 24576, 24576
      %28 = vsyncadd [#allocation3], %s27
      %s29 = sshll.u32 [#allocation2], 4
      %s30 = int_to_ptr.vmem [resolvable:$true] %s29
      %35 = dma.hbm_to_vmem [thread:$0]  %s4, 24576, %s30, [#allocation3], 384, 384, 24
    $region21: #{tpu_custom_call.1} parent=1 // pred_fallthru
      _
    // Predicated region
    $region22: #{tpu_custom_call.1} parent=1 // pred_check
      _
    $region23: #{tpu_custom_call.1} parent=1 // pred_check_branch
      %37 = sbr.rel (0) target = $region25
    $region24: #{tpu_custom_call.1} parent=1 // pred_region
      _
    $region25: #{tpu_custom_call.1} parent=1 // pred_fallthru
      _
    // Predicated region
    $region26: #{tpu_custom_call.1} parent=1 // pred_check
      _
    $region27: #{tpu_custom_call.1} parent=1 // pred_check_branch
      %39 = sbr.rel (0) target = $region29
    $region28: #{tpu_custom_call.1} parent=1 // pred_region
      _
    $region29: #{tpu_custom_call.1} parent=1 // pred_fallthru
      _
    // Predicated region
    $region30: #{tpu_custom_call.1} parent=1 // pred_check
      _
    $region31: #{tpu_custom_call.1} parent=1 // pred_check_branch
      %41 = sbr.rel (0) target = $region33
    $region32: #{tpu_custom_call.1} parent=1 // pred_region
      _
    $region33: #{tpu_custom_call.1} parent=1 // pred_fallthru
      _
    // Predicated region
    $region34: #{tpu_custom_call.1} parent=1 // pred_check
      _
    $region35: #{tpu_custom_call.1} parent=1 // pred_check_branch
      %43 = sbr.rel (0) target = $region37
    $region36: #{tpu_custom_call.1} parent=1 // pred_region
      _
    $region37: #{tpu_custom_call.1} parent=1 // pred_fallthru
      _
    // Predicated region
    $region38: #{tpu_custom_call.1} parent=1 // pred_check
      _
    $region39: #{tpu_custom_call.1} parent=1 // pred_check_branch
      %45 = sbr.rel (0) target = $region41
    $region40: #{tpu_custom_call.1} parent=1 // pred_region
      %46 = dma.done [#allocation3], 24576
    $region41: #{tpu_custom_call.1} parent=1 // pred_fallthru
      _
    %v48 = vld [vmem:[%s0] sm:$0xff]
    %v49 = vld [vmem:[%s3] sm:$0xff]
    %v50 = vld [vmem:[%s3 + $0x8] sm:$0xff]
    %v51 = vld [vmem:[%s3 + $0x10] sm:$0xff]
    %v52 = vld [vmem:[%s3 + $0x18] sm:$0xff]
    %v53 = vld [vmem:[%s3 + $0x20] sm:$0xff]
    %v54 = vld [vmem:[%s3 + $0x28] sm:$0xff]
    %v55 = vld [vmem:[%s3 + $0x30] sm:$0xff]
    %v56 = vld [vmem:[%s3 + $0x38] sm:$0xff]
    %v57 = vld [vmem:[%s3 + $0x40] sm:$0xff]
    %v58 = vld [vmem:[%s3 + $0x48] sm:$0xff]
    %v59 = vld [vmem:[%s3 + $0x50] sm:$0xff]
    %v60 = vld [vmem:[%s3 + $0x58] sm:$0xff]
    %v61 = vld [vmem:[%s3 + $0x60] sm:$0xff]
    %v62 = vld [vmem:[%s3 + $0x68] sm:$0xff]
    %v63 = vld [vmem:[%s3 + $0x70] sm:$0xff]
    %v64 = vld [vmem:[%s3 + $0x78] sm:$0xff]
    %vm65 = vcmask 261120
    %v67 = vsel %vm65, %v48, 0
    %69 = vmatprep.subr.mxu0 %v50
    %70 = vmatpush1.msra.mxu0 %v49
    %71 = vmatprep.subr.mxu0 %v54
    %72 = vmatpush1.msra.mxu0 %v53
    %73 = vmatprep.subr.mxu0 %v58
    %74 = vmatpush1.msra.mxu0 %v57
    %75 = vmatprep.subr.mxu0 %v62
    %76 = vmatpush1.msra.mxu0 %v61
    %77 = vmatprep.subr.mxu0 0.0
    %78 = vmatpush1.msra.mxu0 0.0
    %79 = vmatprep.subr.mxu0 0.0
    %80 = vmatpush1.msra.mxu0 0.0
    %81 = vmatprep.subr.mxu0 0.0
    %82 = vmatpush1.msra.mxu0 0.0
    %83 = vmatprep.subr.mxu0 0.0
    %84 = vmatpush1.msra.mxu0 0.0
    %85 = vmatprep.subr.mxu0 0.0
    %86 = vmatpush1.msra.mxu0 0.0
    %87 = vmatprep.subr.mxu0 0.0
    %88 = vmatpush1.msra.mxu0 0.0
    %89 = vmatprep.subr.mxu0 0.0
    %90 = vmatpush1.msra.mxu0 0.0
    %91 = vmatprep.subr.mxu0 0.0
    %92 = vmatpush1.msra.mxu0 0.0
    %93 = vmatprep.subr.mxu0 0.0
    %94 = vmatpush1.msra.mxu0 0.0
    %95 = vmatprep.subr.mxu0 0.0
    %96 = vmatpush1.msra.mxu0 0.0
    %97 = vmatprep.subr.mxu0 0.0
    %98 = vmatpush1.msra.mxu0 0.0
    %99 = vmatprep.subr.mxu0 0.0
    %100 = vmatpush1.msra.mxu0 0.0
    %101 = vmatprep.subr.mxu0 0.0
    %102 = vmatpush1.msra.mxu0 0.0
    %103 = vmatprep.subr.mxu0 0.0
    %104 = vmatpush1.msra.mxu0 0.0
    %105 = vmatprep.subr.mxu0 0.0
    %106 = vmatpush1.msra.mxu0 0.0
    %107 = vmatprep.subr.mxu0 0.0
    %108 = vmatpush1.msra.mxu0 0.0
    %109 = vmatprep.subr.mxu0 0.0
    %110 = vmatpush1.msra.mxu0 0.0
    %111 = vmatprep.subr.mxu0 0.0
    %112 = vmatpush1.msra.mxu0 0.0
    %113 = vmatprep.subr.mxu0 0.0
    %114 = vmatpush1.msra.mxu0 0.0
    %115 = vmatprep.subr.mxu0 0.0
    %116 = vmatpush1.msra.mxu0 0.0
    %117 = vmatprep.subr.mxu0 0.0
    %118 = vmatpush1.msra.mxu0 0.0
    %119 = vmatprep.subr.mxu0 0.0
    %120 = vmatpush1.msra.mxu0 0.0
    %121 = vmatprep.subr.mxu0 0.0
    %122 = vmatpush1.msra.mxu0 0.0
    %123 = vmatprep.subr.mxu0 0.0
    %124 = vmatpush1.msra.mxu0 0.0
    %125 = vmatprep.subr.mxu0 0.0
    %126 = vmatpush1.msra.mxu0 0.0
    %127 = vmatprep.subr.mxu0 0.0
    %128 = vmatpush1.msra.mxu0 0.0
    %129 = vmatprep.subr.mxu0 0.0
    %130 = vmatpush1.msra.mxu0 0.0
    %131 = vmatprep.subr.mxu0 0.0
    %132 = vmatpush1.msra.mxu0 0.0
    %133 = vmatprep.mubr.f32.mxu0 0.0
    %134 = vmatmul.mubr.f32.gmra.mrb[0].mxu0 %v67
    %v135 = vpop.f32.mrb[0].mxu0
    %v136 = vadd.f32 0.0, %v135
    %v137 = vpop.f32.mrb[0].mxu0
    %v138 = vadd.f32 0.0, %v137
    %139 = vdwg.mxu0
    %140 = vmatprep.subr.mxu0 %v52
    %141 = vmatpush1.msra.mxu0 %v51
    %142 = vmatprep.subr.mxu0 %v56
    %143 = vmatpush1.msra.mxu0 %v55
    %144 = vmatprep.subr.mxu0 %v60
    %145 = vmatpush1.msra.mxu0 %v59
    %146 = vmatprep.subr.mxu0 %v64
    %147 = vmatpush1.msra.mxu0 %v63
    %148 = vmatprep.subr.mxu0 0.0
    %149 = vmatpush1.msra.mxu0 0.0
    %150 = vmatprep.subr.mxu0 0.0
    %151 = vmatpush1.msra.mxu0 0.0
    %152 = vmatprep.subr.mxu0 0.0
    %153 = vmatpush1.msra.mxu0 0.0
    %154 = vmatprep.subr.mxu0 0.0
    %155 = vmatpush1.msra.mxu0 0.0
    %156 = vmatprep.subr.mxu0 0.0
    %157 = vmatpush1.msra.mxu0 0.0
    %158 = vmatprep.subr.mxu0 0.0
    %159 = vmatpush1.msra.mxu0 0.0
    %160 = vmatprep.subr.mxu0 0.0
    %161 = vmatpush1.msra.mxu0 0.0
    %162 = vmatprep.subr.mxu0 0.0
    %163 = vmatpush1.msra.mxu0 0.0
    %164 = vmatprep.subr.mxu0 0.0
    %165 = vmatpush1.msra.mxu0 0.0
    %166 = vmatprep.subr.mxu0 0.0
    %167 = vmatpush1.msra.mxu0 0.0
    %168 = vmatprep.subr.mxu0 0.0
    %169 = vmatpush1.msra.mxu0 0.0
    %170 = vmatprep.subr.mxu0 0.0
    %171 = vmatpush1.msra.mxu0 0.0
    %172 = vmatprep.subr.mxu0 0.0
    %173 = vmatpush1.msra.mxu0 0.0
    %174 = vmatprep.subr.mxu0 0.0
    %175 = vmatpush1.msra.mxu0 0.0
    %176 = vmatprep.subr.mxu0 0.0
    %177 = vmatpush1.msra.mxu0 0.0
    %178 = vmatprep.subr.mxu0 0.0
    %179 = vmatpush1.msra.mxu0 0.0
    %180 = vmatprep.subr.mxu0 0.0
    %181 = vmatpush1.msra.mxu0 0.0
    %182 = vmatprep.subr.mxu0 0.0
    %183 = vmatpush1.msra.mxu0 0.0
    %184 = vmatprep.subr.mxu0 0.0
    %185 = vmatpush1.msra.mxu0 0.0
    %186 = vmatprep.subr.mxu0 0.0
    %187 = vmatpush1.msra.mxu0 0.0
    %188 = vmatprep.subr.mxu0 0.0
    %189 = vmatpush1.msra.mxu0 0.0
    %190 = vmatprep.subr.mxu0 0.0
    %191 = vmatpush1.msra.mxu0 0.0
    %192 = vmatprep.subr.mxu0 0.0
    %193 = vmatpush1.msra.mxu0 0.0
    %194 = vmatprep.subr.mxu0 0.0
    %195 = vmatpush1.msra.mxu0 0.0
    %196 = vmatprep.subr.mxu0 0.0
    %197 = vmatpush1.msra.mxu0 0.0
    %198 = vmatprep.subr.mxu0 0.0
    %199 = vmatpush1.msra.mxu0 0.0
    %200 = vmatprep.subr.mxu0 0.0
    %201 = vmatpush1.msra.mxu0 0.0
    %202 = vmatprep.subr.mxu0 0.0
    %203 = vmatpush1.msra.mxu0 0.0
    %204 = vmatprep.mubr.f32.mxu0 0.0
    %205 = vmatmul.mubr.f32.gmra.mrb[0].mxu0 %v67
    %v206 = vpop.f32.mrb[0].mxu0
    %v207 = vadd.f32 0.0, %v206
    %v208 = vpop.f32.mrb[0].mxu0
    %v209 = vadd.f32 0.0, %v208
    %210 = vdwg.mxu0
    %vm211 = vcmask 64512
    %v213 = vsel %vm211, 1.0, 0
    %215 = vmatprep.subr.mxu0 %v138
    %216 = vmatpush1.msra.mxu0 %v136
    %217 = vmatprep.subr.mxu0 0.0
    %218 = vmatpush1.msra.mxu0 0.0
    %219 = vmatprep.subr.mxu0 0.0
    %220 = vmatpush1.msra.mxu0 0.0
    %221 = vmatprep.subr.mxu0 0.0
    %222 = vmatpush1.msra.mxu0 0.0
    %223 = vmatprep.subr.mxu0 0.0
    %224 = vmatpush1.msra.mxu0 0.0
    %225 = vmatprep.subr.mxu0 0.0
    %226 = vmatpush1.msra.mxu0 0.0
    %227 = vmatprep.subr.mxu0 0.0
    %228 = vmatpush1.msra.mxu0 0.0
    %229 = vmatprep.subr.mxu0 0.0
    %230 = vmatpush1.msra.mxu0 0.0
    %231 = vmatprep.subr.mxu0 0.0
    %232 = vmatpush1.msra.mxu0 0.0
    %233 = vmatprep.subr.mxu0 0.0
    %234 = vmatpush1.msra.mxu0 0.0
    %235 = vmatprep.subr.mxu0 0.0
    %236 = vmatpush1.msra.mxu0 0.0
    %237 = vmatprep.subr.mxu0 0.0
    %238 = vmatpush1.msra.mxu0 0.0
    %239 = vmatprep.subr.mxu0 0.0
    %240 = vmatpush1.msra.mxu0 0.0
    %241 = vmatprep.subr.mxu0 0.0
    %242 = vmatpush1.msra.mxu0 0.0
    %243 = vmatprep.subr.mxu0 0.0
    %244 = vmatpush1.msra.mxu0 0.0
    %245 = vmatprep.subr.mxu0 0.0
    %246 = vmatpush1.msra.mxu0 0.0
    %247 = vmatprep.subr.mxu0 0.0
    %248 = vmatpush1.msra.mxu0 0.0
    %249 = vmatprep.subr.mxu0 0.0
    %250 = vmatpush1.msra.mxu0 0.0
    %251 = vmatprep.subr.mxu0 0.0
    %252 = vmatpush1.msra.mxu0 0.0
    %253 = vmatprep.subr.mxu0 0.0
    %254 = vmatpush1.msra.mxu0 0.0
    %255 = vmatprep.subr.mxu0 0.0
    %256 = vmatpush1.msra.mxu0 0.0
    %257 = vmatprep.subr.mxu0 0.0
    %258 = vmatpush1.msra.mxu0 0.0
    %259 = vmatprep.subr.mxu0 0.0
    %260 = vmatpush1.msra.mxu0 0.0
    %261 = vmatprep.subr.mxu0 0.0
    %262 = vmatpush1.msra.mxu0 0.0
    %263 = vmatprep.subr.mxu0 0.0
    %264 = vmatpush1.msra.mxu0 0.0
    %265 = vmatprep.subr.mxu0 0.0
    %266 = vmatpush1.msra.mxu0 0.0
    %267 = vmatprep.subr.mxu0 0.0
    %268 = vmatpush1.msra.mxu0 0.0
    %269 = vmatprep.subr.mxu0 0.0
    %270 = vmatpush1.msra.mxu0 0.0
    %271 = vmatprep.subr.mxu0 0.0
    %272 = vmatpush1.msra.mxu0 0.0
    %273 = vmatprep.subr.mxu0 0.0
    %274 = vmatpush1.msra.mxu0 0.0
    %275 = vmatprep.subr.mxu0 0.0
    %276 = vmatpush1.msra.mxu0 0.0
    %277 = vmatprep.subr.mxu0 0.0
    %278 = vmatpush1.msra.mxu0 0.0
    %279 = vmatprep.mubr.f32.mxu0 0.0
    %280 = vmatmul.mubr.f32.gmra.mrb[0].mxu0 %v213
    %v281 = vpop.f32.mrb[0].mxu0
    %v282 = vadd.f32 0.0, %v281
    %v283 = vpop.f32.mrb[0].mxu0
    %v284 = vadd.f32 0.0, %v283
    %285 = vdwg.mxu0
    %286 = vmatprep.subr.mxu0 %v209
    %287 = vmatpush1.msra.mxu0 %v207
    %288 = vmatprep.subr.mxu0 0.0
    %289 = vmatpush1.msra.mxu0 0.0
    %290 = vmatprep.subr.mxu0 0.0
    %291 = vmatpush1.msra.mxu0 0.0
    %292 = vmatprep.subr.mxu0 0.0
    %293 = vmatpush1.msra.mxu0 0.0
    %294 = vmatprep.subr.mxu0 0.0
    %295 = vmatpush1.msra.mxu0 0.0
    %296 = vmatprep.subr.mxu0 0.0
    %297 = vmatpush1.msra.mxu0 0.0
    %298 = vmatprep.subr.mxu0 0.0
    %299 = vmatpush1.msra.mxu0 0.0
    %300 = vmatprep.subr.mxu0 0.0
    %301 = vmatpush1.msra.mxu0 0.0
    %302 = vmatprep.subr.mxu0 0.0
    %303 = vmatpush1.msra.mxu0 0.0
    %304 = vmatprep.subr.mxu0 0.0
    %305 = vmatpush1.msra.mxu0 0.0
    %306 = vmatprep.subr.mxu0 0.0
    %307 = vmatpush1.msra.mxu0 0.0
    %308 = vmatprep.subr.mxu0 0.0
    %309 = vmatpush1.msra.mxu0 0.0
    %310 = vmatprep.subr.mxu0 0.0
    %311 = vmatpush1.msra.mxu0 0.0
    %312 = vmatprep.subr.mxu0 0.0
    %313 = vmatpush1.msra.mxu0 0.0
    %314 = vmatprep.subr.mxu0 0.0
    %315 = vmatpush1.msra.mxu0 0.0
    %316 = vmatprep.subr.mxu0 0.0
    %317 = vmatpush1.msra.mxu0 0.0
    %318 = vmatprep.subr.mxu0 0.0
    %319 = vmatpush1.msra.mxu0 0.0
    %320 = vmatprep.subr.mxu0 0.0
    %321 = vmatpush1.msra.mxu0 0.0
    %322 = vmatprep.subr.mxu0 0.0
    %323 = vmatpush1.msra.mxu0 0.0
    %324 = vmatprep.subr.mxu0 0.0
    %325 = vmatpush1.msra.mxu0 0.0
    %326 = vmatprep.subr.mxu0 0.0
    %327 = vmatpush1.msra.mxu0 0.0
    %328 = vmatprep.subr.mxu0 0.0
    %329 = vmatpush1.msra.mxu0 0.0
    %330 = vmatprep.subr.mxu0 0.0
    %331 = vmatpush1.msra.mxu0 0.0
    %332 = vmatprep.subr.mxu0 0.0
    %333 = vmatpush1.msra.mxu0 0.0
    %334 = vmatprep.subr.mxu0 0.0
    %335 = vmatpush1.msra.mxu0 0.0
    %336 = vmatprep.subr.mxu0 0.0
    %337 = vmatpush1.msra.mxu0 0.0
    %338 = vmatprep.subr.mxu0 0.0
    %339 = vmatpush1.msra.mxu0 0.0
    %340 = vmatprep.subr.mxu0 0.0
    %341 = vmatpush1.msra.mxu0 0.0
    %342 = vmatprep.subr.mxu0 0.0
    %343 = vmatpush1.msra.mxu0 0.0
    %344 = vmatprep.subr.mxu0 0.0
    %345 = vmatpush1.msra.mxu0 0.0
    %346 = vmatprep.subr.mxu0 0.0
    %347 = vmatpush1.msra.mxu0 0.0
    %348 = vmatprep.subr.mxu0 0.0
    %349 = vmatpush1.msra.mxu0 0.0
    %350 = vmatprep.mubr.f32.mxu0 0.0
    %351 = vmatmul.mubr.f32.gmra.mrb[0].mxu0 %v213
    %v352 = vpop.f32.mrb[0].mxu0
    %v353 = vadd.f32 0.0, %v352
    %v354 = vpop.f32.mrb[0].mxu0
    %v355 = vadd.f32 0.0, %v354
    %356 = vdwg.mxu0
    %v357 = vmul.f32 %v136, %v136
    %v358 = vmul.f32 %v138, %v138
    %v359 = vmul.f32 %v207, %v207
    %v360 = vmul.f32 %v209, %v209
    %361 = vmatprep.subr.mxu0 %v358
    %362 = vmatpush1.msra.mxu0 %v357
    %363 = vmatprep.subr.mxu0 0.0
    %364 = vmatpush1.msra.mxu0 0.0
    %365 = vmatprep.subr.mxu0 0.0
    %366 = vmatpush1.msra.mxu0 0.0
    %367 = vmatprep.subr.mxu0 0.0
    %368 = vmatpush1.msra.mxu0 0.0
    %369 = vmatprep.subr.mxu0 0.0
    %370 = vmatpush1.msra.mxu0 0.0
    %371 = vmatprep.subr.mxu0 0.0
    %372 = vmatpush1.msra.mxu0 0.0
    %373 = vmatprep.subr.mxu0 0.0
    %374 = vmatpush1.msra.mxu0 0.0
    %375 = vmatprep.subr.mxu0 0.0
    %376 = vmatpush1.msra.mxu0 0.0
    %377 = vmatprep.subr.mxu0 0.0
    %378 = vmatpush1.msra.mxu0 0.0
    %379 = vmatprep.subr.mxu0 0.0
    %380 = vmatpush1.msra.mxu0 0.0
    %381 = vmatprep.subr.mxu0 0.0
    %382 = vmatpush1.msra.mxu0 0.0
    %383 = vmatprep.subr.mxu0 0.0
    %384 = vmatpush1.msra.mxu0 0.0
    %385 = vmatprep.subr.mxu0 0.0
    %386 = vmatpush1.msra.mxu0 0.0
    %387 = vmatprep.subr.mxu0 0.0
    %388 = vmatpush1.msra.mxu0 0.0
    %389 = vmatprep.subr.mxu0 0.0
    %390 = vmatpush1.msra.mxu0 0.0
    %391 = vmatprep.subr.mxu0 0.0
    %392 = vmatpush1.msra.mxu0 0.0
    %393 = vmatprep.subr.mxu0 0.0
    %394 = vmatpush1.msra.mxu0 0.0
    %395 = vmatprep.subr.mxu0 0.0
    %396 = vmatpush1.msra.mxu0 0.0
    %397 = vmatprep.subr.mxu0 0.0
    %398 = vmatpush1.msra.mxu0 0.0
    %399 = vmatprep.subr.mxu0 0.0
    %400 = vmatpush1.msra.mxu0 0.0
    %401 = vmatprep.subr.mxu0 0.0
    %402 = vmatpush1.msra.mxu0 0.0
    %403 = vmatprep.subr.mxu0 0.0
    %404 = vmatpush1.msra.mxu0 0.0
    %405 = vmatprep.subr.mxu0 0.0
    %406 = vmatpush1.msra.mxu0 0.0
    %407 = vmatprep.subr.mxu0 0.0
    %408 = vmatpush1.msra.mxu0 0.0
    %409 = vmatprep.subr.mxu0 0.0
    %410 = vmatpush1.msra.mxu0 0.0
    %411 = vmatprep.subr.mxu0 0.0
    %412 = vmatpush1.msra.mxu0 0.0
    %413 = vmatprep.subr.mxu0 0.0
    %414 = vmatpush1.msra.mxu0 0.0
    %415 = vmatprep.subr.mxu0 0.0
    %416 = vmatpush1.msra.mxu0 0.0
    %417 = vmatprep.subr.mxu0 0.0
    %418 = vmatpush1.msra.mxu0 0.0
    %419 = vmatprep.subr.mxu0 0.0
    %420 = vmatpush1.msra.mxu0 0.0
    %421 = vmatprep.subr.mxu0 0.0
    %422 = vmatpush1.msra.mxu0 0.0
    %423 = vmatprep.subr.mxu0 0.0
    %424 = vmatpush1.msra.mxu0 0.0
    %425 = vmatprep.mubr.f32.mxu0 0.0
    %426 = vmatmul.mubr.f32.gmra.mrb[0].mxu0 %v213
    %v427 = vpop.f32.mrb[0].mxu0
    %v428 = vadd.f32 0.0, %v427
    %v429 = vpop.f32.mrb[0].mxu0
    %v430 = vadd.f32 0.0, %v429
    %431 = vdwg.mxu0
    %432 = vmatprep.subr.mxu0 %v360
    %433 = vmatpush1.msra.mxu0 %v359
    %434 = vmatprep.subr.mxu0 0.0
    %435 = vmatpush1.msra.mxu0 0.0
    %436 = vmatprep.subr.mxu0 0.0
    %437 = vmatpush1.msra.mxu0 0.0
    %438 = vmatprep.subr.mxu0 0.0
    %439 = vmatpush1.msra.mxu0 0.0
    %440 = vmatprep.subr.mxu0 0.0
    %441 = vmatpush1.msra.mxu0 0.0
    %442 = vmatprep.subr.mxu0 0.0
    %443 = vmatpush1.msra.mxu0 0.0
    %444 = vmatprep.subr.mxu0 0.0
    %445 = vmatpush1.msra.mxu0 0.0
    %446 = vmatprep.subr.mxu0 0.0
    %447 = vmatpush1.msra.mxu0 0.0
    %448 = vmatprep.subr.mxu0 0.0
    %449 = vmatpush1.msra.mxu0 0.0
    %450 = vmatprep.subr.mxu0 0.0
    %451 = vmatpush1.msra.mxu0 0.0
    %452 = vmatprep.subr.mxu0 0.0
    %453 = vmatpush1.msra.mxu0 0.0
    %454 = vmatprep.subr.mxu0 0.0
    %455 = vmatpush1.msra.mxu0 0.0
    %456 = vmatprep.subr.mxu0 0.0
    %457 = vmatpush1.msra.mxu0 0.0
    %458 = vmatprep.subr.mxu0 0.0
    %459 = vmatpush1.msra.mxu0 0.0
    %460 = vmatprep.subr.mxu0 0.0
    %461 = vmatpush1.msra.mxu0 0.0
    %462 = vmatprep.subr.mxu0 0.0
    %463 = vmatpush1.msra.mxu0 0.0
    %464 = vmatprep.subr.mxu0 0.0
    %465 = vmatpush1.msra.mxu0 0.0
    %466 = vmatprep.subr.mxu0 0.0
    %467 = vmatpush1.msra.mxu0 0.0
    %468 = vmatprep.subr.mxu0 0.0
    %469 = vmatpush1.msra.mxu0 0.0
    %470 = vmatprep.subr.mxu0 0.0
    %471 = vmatpush1.msra.mxu0 0.0
    %472 = vmatprep.subr.mxu0 0.0
    %473 = vmatpush1.msra.mxu0 0.0
    %474 = vmatprep.subr.mxu0 0.0
    %475 = vmatpush1.msra.mxu0 0.0
    %476 = vmatprep.subr.mxu0 0.0
    %477 = vmatpush1.msra.mxu0 0.0
    %478 = vmatprep.subr.mxu0 0.0
    %479 = vmatpush1.msra.mxu0 0.0
    %480 = vmatprep.subr.mxu0 0.0
    %481 = vmatpush1.msra.mxu0 0.0
    %482 = vmatprep.subr.mxu0 0.0
    %483 = vmatpush1.msra.mxu0 0.0
    %484 = vmatprep.subr.mxu0 0.0
    %485 = vmatpush1.msra.mxu0 0.0
    %486 = vmatprep.subr.mxu0 0.0
    %487 = vmatpush1.msra.mxu0 0.0
    %488 = vmatprep.subr.mxu0 0.0
    %489 = vmatpush1.msra.mxu0 0.0
    %490 = vmatprep.subr.mxu0 0.0
    %491 = vmatpush1.msra.mxu0 0.0
    %492 = vmatprep.subr.mxu0 0.0
    %493 = vmatpush1.msra.mxu0 0.0
    %494 = vmatprep.subr.mxu0 0.0
    %495 = vmatpush1.msra.mxu0 0.0
    %496 = vmatprep.mubr.f32.mxu0 0.0
    %497 = vmatmul.mubr.f32.gmra.mrb[0].mxu0 %v213
    %v498 = vpop.f32.mrb[0].mxu0
    %v499 = vadd.f32 0.0, %v498
    %v500 = vpop.f32.mrb[0].mxu0
    %v501 = vadd.f32 0.0, %v500
    %502 = vdwg.mxu0
    %v503 = vmul.f32 %v282, 0.125
    %v504 = vmul.f32 %v284, 0.125
    %v505 = vmul.f32 %v353, 0.125
    %v506 = vmul.f32 %v355, 0.125
    %v507 = vmul.f32 %v428, 0.125
    %v508 = vmul.f32 %v430, 0.125
    %v509 = vmul.f32 %v499, 0.125
    %v510 = vmul.f32 %v501, 0.125
    %v511 = vmul.f32 %v503, %v503
    %v512 = vmul.f32 %v504, %v504
    %v513 = vmul.f32 %v505, %v505
    %v514 = vmul.f32 %v506, %v506
    %v515 = vsub.f32 %v507, %v511
    %v516 = vsub.f32 %v508, %v512
    %v517 = vsub.f32 %v509, %v513
    %v518 = vsub.f32 %v510, %v514
    %v519 = vmax.f32 %v515, 0.0
    %v520 = vmax.f32 %v516, 0.0
    %v521 = vmax.f32 %v517, 0.0
    %v522 = vmax.f32 %v518, 0.0
    %v523 = vadd.f32 %v519, 1e-05
    %v524 = vadd.f32 %v520, 1e-05
    %v525 = vadd.f32 %v521, 1e-05
    %v526 = vadd.f32 %v522, 1e-05
    %v527 = vrsqrt.pop %v523
    %v528 = vrsqrt.pop %v524
    %v529 = vrsqrt.pop %v525
    %v530 = vrsqrt.pop %v526
    %v531 = vld [vmem:[%s2] ss:$2 sm:$0xf]
    %v536 = vcombine.low %v527, %v528
    %v537 = vcombine.low %v529, %v530
    %v539 = vunpack.c.l.s4 1966171168
    %v540 = vunpack.c.0.s8 %v539
    %v541 = vlaneseq
    %v542 = vshrl.u32 %v541, 7
    %v543 = vsub.s32 %v540, %v542
    %v544 = vrot.slane %v536, %v543
    %v546 = vunpack.c.l.s4 1966171168
    %v547 = vunpack.c.0.s8 %v546
    %v548 = vlaneseq
    %v549 = vshrl.u32 %v548, 7
    %v550 = vsub.s32 %v547, %v549
    %v551 = vrot.slane %v537, %v550
    %v552 = vcombine.low %v544, %v551
    %v554 = vunpack.c.l.s4 1966171168
    %v555 = vunpack.c.0.s8 %v554
    %v556 = vlaneseq
    %v557 = vshrl.u32 %v556, 7
    %v558 = vsub.s32 %v555, %v557
    %v559 = vrot.slane %v552, %v558
    %v561 = vmul.f32 %v531, %v559
    %s562 = scalar_lea.vmem %s2, 1
    %v563 = vld [vmem:[%s562] ss:$2 sm:$0xf]
    %v565 = vlaneseq
    %v566 = vshrl.u32 %v565, 7
    %v567 = vsub.s32 0, %v566
    %v568 = vrot.slane %v561, %v567
    %v569 = vlaneseq
    %v570 = vshrl.u32 %v569, 7
    %v571 = vsub.s32 1, %v570
    %v572 = vrot.slane %v561, %v571
    %v573 = vlaneseq
    %v574 = vshrl.u32 %v573, 7
    %v575 = vsub.s32 2, %v574
    %v576 = vrot.slane %v561, %v575
    %v577 = vlaneseq
    %v578 = vshrl.u32 %v577, 7
    %v579 = vsub.s32 3, %v578
    %v580 = vrot.slane %v561, %v579
    %v585 = vmul.f32 %v503, %v568
    %v586 = vmul.f32 %v504, %v572
    %v587 = vmul.f32 %v505, %v576
    %v588 = vmul.f32 %v506, %v580
    %v593 = vcombine.low %v585, %v586
    %v594 = vcombine.low %v587, %v588
    %v596 = vunpack.c.l.s4 1966171168
    %v597 = vunpack.c.0.s8 %v596
    %v598 = vlaneseq
    %v599 = vshrl.u32 %v598, 7
    %v600 = vsub.s32 %v597, %v599
    %v601 = vrot.slane %v593, %v600
    %v603 = vunpack.c.l.s4 1966171168
    %v604 = vunpack.c.0.s8 %v603
    %v605 = vlaneseq
    %v606 = vshrl.u32 %v605, 7
    %v607 = vsub.s32 %v604, %v606
    %v608 = vrot.slane %v594, %v607
    %v609 = vcombine.low %v601, %v608
    %v611 = vunpack.c.l.s4 1966171168
    %v612 = vunpack.c.0.s8 %v611
    %v613 = vlaneseq
    %v614 = vshrl.u32 %v613, 7
    %v615 = vsub.s32 %v612, %v614
    %v616 = vrot.slane %v609, %v615
    %v618 = vsub.f32 %v563, %v616
    %v619 = vmul.f32 %v136, %v568
    %v620 = vmul.f32 %v138, %v572
    %v621 = vmul.f32 %v207, %v576
    %v622 = vmul.f32 %v209, %v580
    %v624 = vlaneseq
    %v625 = vshrl.u32 %v624, 7
    %v626 = vsub.s32 0, %v625
    %v627 = vrot.slane %v618, %v626
    %v628 = vlaneseq
    %v629 = vshrl.u32 %v628, 7
    %v630 = vsub.s32 1, %v629
    %v631 = vrot.slane %v618, %v630
    %v632 = vlaneseq
    %v633 = vshrl.u32 %v632, 7
    %v634 = vsub.s32 2, %v633
    %v635 = vrot.slane %v618, %v634
    %v636 = vlaneseq
    %v637 = vshrl.u32 %v636, 7
    %v638 = vsub.s32 3, %v637
    %v639 = vrot.slane %v618, %v638
    %v644 = vadd.f32 %v619, %v627
    %v645 = vadd.f32 %v620, %v631
    %v646 = vadd.f32 %v621, %v635
    %v647 = vadd.f32 %v622, %v639
    %v648 = vmax.f32 %v644, 0.0
    %v649 = vmax.f32 %v645, 0.0
    %v650 = vmax.f32 %v646, 0.0
    %v651 = vmax.f32 %v647, 0.0
    %v652 = vld [vmem:[#allocation2] sm:$0xff]
    %v653 = vld [vmem:[#allocation2 + $0x8] sm:$0xff]
    %v654 = vld [vmem:[#allocation2 + $0x10] sm:$0xff]
    %v655 = vld [vmem:[#allocation2 + $0x18] sm:$0xff]
    %v656 = vld [vmem:[#allocation2 + $0x20] sm:$0xff]
    %v657 = vld [vmem:[#allocation2 + $0x28] sm:$0xff]
    %v658 = vld [vmem:[#allocation2 + $0x30] sm:$0xff]
    %v659 = vld [vmem:[#allocation2 + $0x38] sm:$0xff]
    %v660 = vld [vmem:[#allocation2 + $0x40] sm:$0xff]
    %v661 = vld [vmem:[#allocation2 + $0x48] sm:$0xff]
    %v662 = vld [vmem:[#allocation2 + $0x50] sm:$0xff]
    %v663 = vld [vmem:[#allocation2 + $0x58] sm:$0xff]
    %v664 = vld [vmem:[#allocation2 + $0x60] sm:$0xff]
    %v665 = vld [vmem:[#allocation2 + $0x68] sm:$0xff]
    %v666 = vld [vmem:[#allocation2 + $0x70] sm:$0xff]
    %v667 = vld [vmem:[#allocation2 + $0x78] sm:$0xff]
    %v668 = vld [vmem:[#allocation2 + $0x80] sm:$0xff]
    %v669 = vld [vmem:[#allocation2 + $0x88] sm:$0xff]
    %v670 = vld [vmem:[#allocation2 + $0x90] sm:$0xff]
    %v671 = vld [vmem:[#allocation2 + $0x98] sm:$0xff]
    %v672 = vld [vmem:[#allocation2 + $0xa0] sm:$0xff]
    %v673 = vld [vmem:[#allocation2 + $0xa8] sm:$0xff]
    %v674 = vld [vmem:[#allocation2 + $0xb0] sm:$0xff]
    %v675 = vld [vmem:[#allocation2 + $0xb8] sm:$0xff]
    %v676 = vld [vmem:[#allocation2 + $0xc0] sm:$0xff]
    %v677 = vld [vmem:[#allocation2 + $0xc8] sm:$0xff]
    %v678 = vld [vmem:[#allocation2 + $0xd0] sm:$0xff]
    %v679 = vld [vmem:[#allocation2 + $0xd8] sm:$0xff]
    %v680 = vld [vmem:[#allocation2 + $0xe0] sm:$0xff]
    %v681 = vld [vmem:[#allocation2 + $0xe8] sm:$0xff]
    %v682 = vld [vmem:[#allocation2 + $0xf0] sm:$0xff]
    %v683 = vld [vmem:[#allocation2 + $0xf8] sm:$0xff]
    %v684 = vld [vmem:[#allocation2 + $0x100] sm:$0xff]
    %v685 = vld [vmem:[#allocation2 + $0x108] sm:$0xff]
    %v686 = vld [vmem:[#allocation2 + $0x110] sm:$0xff]
    %v687 = vld [vmem:[#allocation2 + $0x118] sm:$0xff]
    %v688 = vld [vmem:[#allocation2 + $0x120] sm:$0xff]
    %v689 = vld [vmem:[#allocation2 + $0x128] sm:$0xff]
    %v690 = vld [vmem:[#allocation2 + $0x130] sm:$0xff]
    %v691 = vld [vmem:[#allocation2 + $0x138] sm:$0xff]
    %v692 = vld [vmem:[#allocation2 + $0x140] sm:$0xff]
    %v693 = vld [vmem:[#allocation2 + $0x148] sm:$0xff]
    %v694 = vld [vmem:[#allocation2 + $0x150] sm:$0xff]
    %v695 = vld [vmem:[#allocation2 + $0x158] sm:$0xff]
    %v696 = vld [vmem:[#allocation2 + $0x160] sm:$0xff]
    %v697 = vld [vmem:[#allocation2 + $0x168] sm:$0xff]
    %v698 = vld [vmem:[#allocation2 + $0x170] sm:$0xff]
    %v699 = vld [vmem:[#allocation2 + $0x178] sm:$0xff]
    %v700 = vld [vmem:[#allocation2 + $0x180] sm:$0xff]
    %v701 = vld [vmem:[#allocation2 + $0x188] sm:$0xff]
    %v702 = vld [vmem:[#allocation2 + $0x190] sm:$0xff]
    %v703 = vld [vmem:[#allocation2 + $0x198] sm:$0xff]
    %v704 = vld [vmem:[#allocation2 + $0x1a0] sm:$0xff]
    %v705 = vld [vmem:[#allocation2 + $0x1a8] sm:$0xff]
    %v706 = vld [vmem:[#allocation2 + $0x1b0] sm:$0xff]
    %v707 = vld [vmem:[#allocation2 + $0x1b8] sm:$0xff]
    %v708 = vld [vmem:[#allocation2 + $0x1c0] sm:$0xff]
    %v709 = vld [vmem:[#allocation2 + $0x1c8] sm:$0xff]
    %v710 = vld [vmem:[#allocation2 + $0x1d0] sm:$0xff]
    %v711 = vld [vmem:[#allocation2 + $0x1d8] sm:$0xff]
    %v712 = vld [vmem:[#allocation2 + $0x1e0] sm:$0xff]
    %v713 = vld [vmem:[#allocation2 + $0x1e8] sm:$0xff]
    %v714 = vld [vmem:[#allocation2 + $0x1f0] sm:$0xff]
    %v715 = vld [vmem:[#allocation2 + $0x1f8] sm:$0xff]
    %v716 = vld [vmem:[#allocation2 + $0x200] sm:$0xff]
    %v717 = vld [vmem:[#allocation2 + $0x208] sm:$0xff]
    %v718 = vld [vmem:[#allocation2 + $0x210] sm:$0xff]
    %v719 = vld [vmem:[#allocation2 + $0x218] sm:$0xff]
    %v720 = vld [vmem:[#allocation2 + $0x220] sm:$0xff]
    %v721 = vld [vmem:[#allocation2 + $0x228] sm:$0xff]
    %v722 = vld [vmem:[#allocation2 + $0x230] sm:$0xff]
    %v723 = vld [vmem:[#allocation2 + $0x238] sm:$0xff]
    %v724 = vld [vmem:[#allocation2 + $0x240] sm:$0xff]
    %v725 = vld [vmem:[#allocation2 + $0x248] sm:$0xff]
    %v726 = vld [vmem:[#allocation2 + $0x250] sm:$0xff]
    %v727 = vld [vmem:[#allocation2 + $0x258] sm:$0xff]
    %v728 = vld [vmem:[#allocation2 + $0x260] sm:$0xff]
    %v729 = vld [vmem:[#allocation2 + $0x268] sm:$0xff]
    %v730 = vld [vmem:[#allocation2 + $0x270] sm:$0xff]
    %v731 = vld [vmem:[#allocation2 + $0x278] sm:$0xff]
    %v732 = vld [vmem:[#allocation2 + $0x280] sm:$0xff]
    %v733 = vld [vmem:[#allocation2 + $0x288] sm:$0xff]
    %v734 = vld [vmem:[#allocation2 + $0x290] sm:$0xff]
    %v735 = vld [vmem:[#allocation2 + $0x298] sm:$0xff]
    %v736 = vld [vmem:[#allocation2 + $0x2a0] sm:$0xff]
    %v737 = vld [vmem:[#allocation2 + $0x2a8] sm:$0xff]
    %v738 = vld [vmem:[#allocation2 + $0x2b0] sm:$0xff]
    %v739 = vld [vmem:[#allocation2 + $0x2b8] sm:$0xff]
    %v740 = vld [vmem:[#allocation2 + $0x2c0] sm:$0xff]
    %v741 = vld [vmem:[#allocation2 + $0x2c8] sm:$0xff]
    %v742 = vld [vmem:[#allocation2 + $0x2d0] sm:$0xff]
    %v743 = vld [vmem:[#allocation2 + $0x2d8] sm:$0xff]
    %v744 = vld [vmem:[#allocation2 + $0x2e0] sm:$0xff]
    %v745 = vld [vmem:[#allocation2 + $0x2e8] sm:$0xff]
    %v746 = vld [vmem:[#allocation2 + $0x2f0] sm:$0xff]
    %v747 = vld [vmem:[#allocation2 + $0x2f8] sm:$0xff]
    %v748 = vld [vmem:[#allocation2 + $0x300] sm:$0xff]
    %v749 = vld [vmem:[#allocation2 + $0x308] sm:$0xff]
    %v750 = vld [vmem:[#allocation2 + $0x310] sm:$0xff]
    %v751 = vld [vmem:[#allocation2 + $0x318] sm:$0xff]
    %v752 = vld [vmem:[#allocation2 + $0x320] sm:$0xff]
    %v753 = vld [vmem:[#allocation2 + $0x328] sm:$0xff]
    %v754 = vld [vmem:[#allocation2 + $0x330] sm:$0xff]
    %v755 = vld [vmem:[#allocation2 + $0x338] sm:$0xff]
    %v756 = vld [vmem:[#allocation2 + $0x340] sm:$0xff]
    %v757 = vld [vmem:[#allocation2 + $0x348] sm:$0xff]
    %v758 = vld [vmem:[#allocation2 + $0x350] sm:$0xff]
    %v759 = vld [vmem:[#allocation2 + $0x358] sm:$0xff]
    %v760 = vld [vmem:[#allocation2 + $0x360] sm:$0xff]
    %v761 = vld [vmem:[#allocation2 + $0x368] sm:$0xff]
    %v762 = vld [vmem:[#allocation2 + $0x370] sm:$0xff]
    %v763 = vld [vmem:[#allocation2 + $0x378] sm:$0xff]
    %v764 = vld [vmem:[#allocation2 + $0x380] sm:$0xff]
    %v765 = vld [vmem:[#allocation2 + $0x388] sm:$0xff]
    %v766 = vld [vmem:[#allocation2 + $0x390] sm:$0xff]
    %v767 = vld [vmem:[#allocation2 + $0x398] sm:$0xff]
    %v768 = vld [vmem:[#allocation2 + $0x3a0] sm:$0xff]
    %v769 = vld [vmem:[#allocation2 + $0x3a8] sm:$0xff]
    %v770 = vld [vmem:[#allocation2 + $0x3b0] sm:$0xff]
    %v771 = vld [vmem:[#allocation2 + $0x3b8] sm:$0xff]
    %v772 = vld [vmem:[#allocation2 + $0x3c0] sm:$0xff]
    %v773 = vld [vmem:[#allocation2 + $0x3c8] sm:$0xff]
    %v774 = vld [vmem:[#allocation2 + $0x3d0] sm:$0xff]
    %v775 = vld [vmem:[#allocation2 + $0x3d8] sm:$0xff]
    %v776 = vld [vmem:[#allocation2 + $0x3e0] sm:$0xff]
    %v777 = vld [vmem:[#allocation2 + $0x3e8] sm:$0xff]
    %v778 = vld [vmem:[#allocation2 + $0x3f0] sm:$0xff]
    %v779 = vld [vmem:[#allocation2 + $0x3f8] sm:$0xff]
    %v780 = vld [vmem:[#allocation2 + $0x400] sm:$0xff]
    %v781 = vld [vmem:[#allocation2 + $0x408] sm:$0xff]
    %v782 = vld [vmem:[#allocation2 + $0x410] sm:$0xff]
    %v783 = vld [vmem:[#allocation2 + $0x418] sm:$0xff]
    %v784 = vld [vmem:[#allocation2 + $0x420] sm:$0xff]
    %v785 = vld [vmem:[#allocation2 + $0x428] sm:$0xff]
    %v786 = vld [vmem:[#allocation2 + $0x430] sm:$0xff]
    %v787 = vld [vmem:[#allocation2 + $0x438] sm:$0xff]
    %v788 = vld [vmem:[#allocation2 + $0x440] sm:$0xff]
    %v789 = vld [vmem:[#allocation2 + $0x448] sm:$0xff]
    %v790 = vld [vmem:[#allocation2 + $0x450] sm:$0xff]
    %v791 = vld [vmem:[#allocation2 + $0x458] sm:$0xff]
    %v792 = vld [vmem:[#allocation2 + $0x460] sm:$0xff]
    %v793 = vld [vmem:[#allocation2 + $0x468] sm:$0xff]
    %v794 = vld [vmem:[#allocation2 + $0x470] sm:$0xff]
    %v795 = vld [vmem:[#allocation2 + $0x478] sm:$0xff]
    %v796 = vld [vmem:[#allocation2 + $0x480] sm:$0xff]
    %v797 = vld [vmem:[#allocation2 + $0x488] sm:$0xff]
    %v798 = vld [vmem:[#allocation2 + $0x490] sm:$0xff]
    %v799 = vld [vmem:[#allocation2 + $0x498] sm:$0xff]
    %v800 = vld [vmem:[#allocation2 + $0x4a0] sm:$0xff]
    %v801 = vld [vmem:[#allocation2 + $0x4a8] sm:$0xff]
    %v802 = vld [vmem:[#allocation2 + $0x4b0] sm:$0xff]
    %v803 = vld [vmem:[#allocation2 + $0x4b8] sm:$0xff]
    %v804 = vld [vmem:[#allocation2 + $0x4c0] sm:$0xff]
    %v805 = vld [vmem:[#allocation2 + $0x4c8] sm:$0xff]
    %v806 = vld [vmem:[#allocation2 + $0x4d0] sm:$0xff]
    %v807 = vld [vmem:[#allocation2 + $0x4d8] sm:$0xff]
    %v808 = vld [vmem:[#allocation2 + $0x4e0] sm:$0xff]
    %v809 = vld [vmem:[#allocation2 + $0x4e8] sm:$0xff]
    %v810 = vld [vmem:[#allocation2 + $0x4f0] sm:$0xff]
    %v811 = vld [vmem:[#allocation2 + $0x4f8] sm:$0xff]
    %v812 = vld [vmem:[#allocation2 + $0x500] sm:$0xff]
    %v813 = vld [vmem:[#allocation2 + $0x508] sm:$0xff]
    %v814 = vld [vmem:[#allocation2 + $0x510] sm:$0xff]
    %v815 = vld [vmem:[#allocation2 + $0x518] sm:$0xff]
    %v816 = vld [vmem:[#allocation2 + $0x520] sm:$0xff]
    %v817 = vld [vmem:[#allocation2 + $0x528] sm:$0xff]
    %v818 = vld [vmem:[#allocation2 + $0x530] sm:$0xff]
    %v819 = vld [vmem:[#allocation2 + $0x538] sm:$0xff]
    %v820 = vld [vmem:[#allocation2 + $0x540] sm:$0xff]
    %v821 = vld [vmem:[#allocation2 + $0x548] sm:$0xff]
    %v822 = vld [vmem:[#allocation2 + $0x550] sm:$0xff]
    %v823 = vld [vmem:[#allocation2 + $0x558] sm:$0xff]
    %v824 = vld [vmem:[#allocation2 + $0x560] sm:$0xff]
    %v825 = vld [vmem:[#allocation2 + $0x568] sm:$0xff]
    %v826 = vld [vmem:[#allocation2 + $0x570] sm:$0xff]
    %v827 = vld [vmem:[#allocation2 + $0x578] sm:$0xff]
    %v828 = vld [vmem:[#allocation2 + $0x580] sm:$0xff]
    %v829 = vld [vmem:[#allocation2 + $0x588] sm:$0xff]
    %v830 = vld [vmem:[#allocation2 + $0x590] sm:$0xff]
    %v831 = vld [vmem:[#allocation2 + $0x598] sm:$0xff]
    %v832 = vld [vmem:[#allocation2 + $0x5a0] sm:$0xff]
    %v833 = vld [vmem:[#allocation2 + $0x5a8] sm:$0xff]
    %v834 = vld [vmem:[#allocation2 + $0x5b0] sm:$0xff]
    %v835 = vld [vmem:[#allocation2 + $0x5b8] sm:$0xff]
    %v836 = vld [vmem:[#allocation2 + $0x5c0] sm:$0xff]
    %v837 = vld [vmem:[#allocation2 + $0x5c8] sm:$0xff]
    %v838 = vld [vmem:[#allocation2 + $0x5d0] sm:$0xff]
    %v839 = vld [vmem:[#allocation2 + $0x5d8] sm:$0xff]
    %v840 = vld [vmem:[#allocation2 + $0x5e0] sm:$0xff]
    %v841 = vld [vmem:[#allocation2 + $0x5e8] sm:$0xff]
    %v842 = vld [vmem:[#allocation2 + $0x5f0] sm:$0xff]
    %v843 = vld [vmem:[#allocation2 + $0x5f8] sm:$0xff]
    %v844 = vpack.c.bf16 %v648, %v648
    %v845 = vpack.c.bf16 %v649, %v649
    %v846 = vpack.c.bf16 %v650, %v650
    %v847 = vpack.c.bf16 %v651, %v651
    %v848 = vpack.c.bf16 %v655, %v652
    %v849 = vpack.c.bf16 %v656, %v653
    %v850 = vpack.c.bf16 %v657, %v654
    %v851 = vpack.c.bf16 %v661, %v658
    %v852 = vpack.c.bf16 %v662, %v659
    %v853 = vpack.c.bf16 %v663, %v660
    %v854 = vpack.c.bf16 %v667, %v664
    %v855 = vpack.c.bf16 %v668, %v665
    %v856 = vpack.c.bf16 %v669, %v666
    %v857 = vpack.c.bf16 %v673, %v670
    %v858 = vpack.c.bf16 %v674, %v671
    %v859 = vpack.c.bf16 %v675, %v672
    %v860 = vpack.c.bf16 %v679, %v676
    %v861 = vpack.c.bf16 %v680, %v677
    %v862 = vpack.c.bf16 %v681, %v678
    %v863 = vpack.c.bf16 %v685, %v682
    %v864 = vpack.c.bf16 %v686, %v683
    %v865 = vpack.c.bf16 %v687, %v684
    %v866 = vpack.c.bf16 %v691, %v688
    %v867 = vpack.c.bf16 %v692, %v689
    %v868 = vpack.c.bf16 %v693, %v690
    %v869 = vpack.c.bf16 %v697, %v694
    %v870 = vpack.c.bf16 %v698, %v695
    %v871 = vpack.c.bf16 %v699, %v696
    %v872 = vpack.c.bf16 %v703, %v700
    %v873 = vpack.c.bf16 %v704, %v701
    %v874 = vpack.c.bf16 %v705, %v702
    %v875 = vpack.c.bf16 %v709, %v706
    %v876 = vpack.c.bf16 %v710, %v707
    %v877 = vpack.c.bf16 %v711, %v708
    %v878 = vpack.c.bf16 %v715, %v712
    %v879 = vpack.c.bf16 %v716, %v713
    %v880 = vpack.c.bf16 %v717, %v714
    %v881 = vpack.c.bf16 %v721, %v718
    %v882 = vpack.c.bf16 %v722, %v719
    %v883 = vpack.c.bf16 %v723, %v720
    %v884 = vpack.c.bf16 %v727, %v724
    %v885 = vpack.c.bf16 %v728, %v725
    %v886 = vpack.c.bf16 %v729, %v726
    %v887 = vpack.c.bf16 %v733, %v730
    %v888 = vpack.c.bf16 %v734, %v731
    %v889 = vpack.c.bf16 %v735, %v732
    %v890 = vpack.c.bf16 %v739, %v736
    %v891 = vpack.c.bf16 %v740, %v737
    %v892 = vpack.c.bf16 %v741, %v738
    %v893 = vpack.c.bf16 %v745, %v742
    %v894 = vpack.c.bf16 %v746, %v743
    %v895 = vpack.c.bf16 %v747, %v744
    %v896 = vpack.c.bf16 %v751, %v748
    %v897 = vpack.c.bf16 %v752, %v749
    %v898 = vpack.c.bf16 %v753, %v750
    %v899 = vpack.c.bf16 %v757, %v754
    %v900 = vpack.c.bf16 %v758, %v755
    %v901 = vpack.c.bf16 %v759, %v756
    %v902 = vpack.c.bf16 %v763, %v760
    %v903 = vpack.c.bf16 %v764, %v761
    %v904 = vpack.c.bf16 %v765, %v762
    %v905 = vpack.c.bf16 %v769, %v766
    %v906 = vpack.c.bf16 %v770, %v767
    %v907 = vpack.c.bf16 %v771, %v768
    %v908 = vpack.c.bf16 %v775, %v772
    %v909 = vpack.c.bf16 %v776, %v773
    %v910 = vpack.c.bf16 %v777, %v774
    %v911 = vpack.c.bf16 %v781, %v778
    %v912 = vpack.c.bf16 %v782, %v779
    %v913 = vpack.c.bf16 %v783, %v780
    %v914 = vpack.c.bf16 %v787, %v784
    %v915 = vpack.c.bf16 %v788, %v785
    %v916 = vpack.c.bf16 %v789, %v786
    %v917 = vpack.c.bf16 %v793, %v790
    %v918 = vpack.c.bf16 %v794, %v791
    %v919 = vpack.c.bf16 %v795, %v792
    %v920 = vpack.c.bf16 %v799, %v796
    %v921 = vpack.c.bf16 %v800, %v797
    %v922 = vpack.c.bf16 %v801, %v798
    %v923 = vpack.c.bf16 %v805, %v802
    %v924 = vpack.c.bf16 %v806, %v803
    %v925 = vpack.c.bf16 %v807, %v804
    %v926 = vpack.c.bf16 %v811, %v808
    %v927 = vpack.c.bf16 %v812, %v809
    %v928 = vpack.c.bf16 %v813, %v810
    %v929 = vpack.c.bf16 %v817, %v814
    %v930 = vpack.c.bf16 %v818, %v815
    %v931 = vpack.c.bf16 %v819, %v816
    %v932 = vpack.c.bf16 %v823, %v820
    %v933 = vpack.c.bf16 %v824, %v821
    %v934 = vpack.c.bf16 %v825, %v822
    %v935 = vpack.c.bf16 %v829, %v826
    %v936 = vpack.c.bf16 %v830, %v827
    %v937 = vpack.c.bf16 %v831, %v828
    %v938 = vpack.c.bf16 %v835, %v832
    %v939 = vpack.c.bf16 %v836, %v833
    %v940 = vpack.c.bf16 %v837, %v834
    %v941 = vpack.c.bf16 %v841, %v838
    %v942 = vpack.c.bf16 %v842, %v839
    %v943 = vpack.c.bf16 %v843, %v840
    %v944 = vld [vmem:[%s1] sm:$0xff]
    %v945 = vld [vmem:[%s5] sm:$0xff]
    %v946 = vld [vmem:[%s5 + $0x8] sm:$0xff]
    %v947 = vld [vmem:[%s5 + $0x10] sm:$0xff]
    %v948 = vpack.c.bf16 %v944, %v944
    %v949 = vpack.c.bf16 %v945, %v945
    %v950 = vpack.c.bf16 %v946, %v946
    %v951 = vpack.c.bf16 %v947, %v947
    %v953 = vsel %vm211, %v948, 0
    %vm955 = vcmask 1043456
    %v957 = vsel %vm955, %v949, 0
    %v960 = vsel %vm955, %v950, 0
    %v963 = vsel %vm955, %v951, 0
    %965 = vmatprep.subr.bf16.mxu0 %v960
    %966 = vmatpush1.bf16.msra.mxu0 %v957
    %967 = vmatprep.subr.bf16.mxu0 0
    %968 = vmatpush1.bf16.msra.mxu0 0
    %969 = vmatprep.subr.bf16.mxu0 0
    %970 = vmatpush1.bf16.msra.mxu0 0
    %971 = vmatprep.subr.bf16.mxu0 0
    %972 = vmatpush1.bf16.msra.mxu0 0
    %973 = vmatprep.subr.bf16.mxu0 0
    %974 = vmatpush1.bf16.msra.mxu0 0
    %975 = vmatprep.subr.bf16.mxu0 0
    %976 = vmatpush1.bf16.msra.mxu0 0
    %977 = vmatprep.subr.bf16.mxu0 0
    %978 = vmatpush1.bf16.msra.mxu0 0
    %979 = vmatprep.subr.bf16.mxu0 0
    %980 = vmatpush1.bf16.msra.mxu0 0
    %981 = vmatprep.subr.bf16.mxu0 0
    %982 = vmatpush1.bf16.msra.mxu0 0
    %983 = vmatprep.subr.bf16.mxu0 0
    %984 = vmatpush1.bf16.msra.mxu0 0
    %985 = vmatprep.subr.bf16.mxu0 0
    %986 = vmatpush1.bf16.msra.mxu0 0
    %987 = vmatprep.subr.bf16.mxu0 0
    %988 = vmatpush1.bf16.msra.mxu0 0
    %989 = vmatprep.subr.bf16.mxu0 0
    %990 = vmatpush1.bf16.msra.mxu0 0
    %991 = vmatprep.subr.bf16.mxu0 0
    %992 = vmatpush1.bf16.msra.mxu0 0
    %993 = vmatprep.subr.bf16.mxu0 0
    %994 = vmatpush1.bf16.msra.mxu0 0
    %995 = vmatprep.subr.bf16.mxu0 0
    %996 = vmatpush1.bf16.msra.mxu0 0
    %997 = vmatprep.mubr.bf16.mxu0 0
    %998 = vmatmul.mubr.bf16.gmra.mrb[0].mxu0 %v953
    %v999 = vpop.f32.mrb[0].mxu0
    %v1000 = vadd.f32 0.0, %v999
    %v1001 = vpop.f32.mrb[0].mxu0
    %v1002 = vadd.f32 0.0, %v1001
    %v1003 = vpop.f32.mrb[0].mxu0
    %v1004 = vpop.f32.mrb[0].mxu0
    %1005 = vdwg.mxu0
    %1006 = vmatprep.subr.bf16.mxu0 0
    %1007 = vmatpush1.bf16.msra.mxu0 %v963
    %1008 = vmatprep.subr.bf16.mxu0 0
    %1009 = vmatpush1.bf16.msra.mxu0 0
    %1010 = vmatprep.subr.bf16.mxu0 0
    %1011 = vmatpush1.bf16.msra.mxu0 0
    %1012 = vmatprep.subr.bf16.mxu0 0
    %1013 = vmatpush1.bf16.msra.mxu0 0
    %1014 = vmatprep.subr.bf16.mxu0 0
    %1015 = vmatpush1.bf16.msra.mxu0 0
    %1016 = vmatprep.subr.bf16.mxu0 0
    %1017 = vmatpush1.bf16.msra.mxu0 0
    %1018 = vmatprep.subr.bf16.mxu0 0
    %1019 = vmatpush1.bf16.msra.mxu0 0
    %1020 = vmatprep.subr.bf16.mxu0 0
    %1021 = vmatpush1.bf16.msra.mxu0 0
    %1022 = vmatprep.subr.bf16.mxu0 0
    %1023 = vmatpush1.bf16.msra.mxu0 0
    %1024 = vmatprep.subr.bf16.mxu0 0
    %1025 = vmatpush1.bf16.msra.mxu0 0
    %1026 = vmatprep.subr.bf16.mxu0 0
    %1027 = vmatpush1.bf16.msra.mxu0 0
    %1028 = vmatprep.subr.bf16.mxu0 0
    %1029 = vmatpush1.bf16.msra.mxu0 0
    %1030 = vmatprep.subr.bf16.mxu0 0
    %1031 = vmatpush1.bf16.msra.mxu0 0
    %1032 = vmatprep.subr.bf16.mxu0 0
    %1033 = vmatpush1.bf16.msra.mxu0 0
    %1034 = vmatprep.subr.bf16.mxu0 0
    %1035 = vmatpush1.bf16.msra.mxu0 0
    %1036 = vmatprep.subr.bf16.mxu0 0
    %1037 = vmatpush1.bf16.msra.mxu0 0
    %1038 = vmatprep.mubr.bf16.mxu0 0
    %1039 = vmatmul.mubr.bf16.gmra.mrb[0].mxu0 %v953
    %v1040 = vpop.f32.mrb[0].mxu0
    %v1041 = vadd.f32 0.0, %v1040
    %v1042 = vpop.f32.mrb[0].mxu0
    %v1043 = vpop.f32.mrb[0].mxu0
    %v1044 = vpop.f32.mrb[0].mxu0
    %1045 = vdwg.mxu0
    %1046 = vmatprep.subr.bf16.mxu0 %v849
    %1047 = vmatpush1.bf16.msra.mxu0 %v848
    %1048 = vmatprep.subr.bf16.mxu0 %v852
    %1049 = vmatpush1.bf16.msra.mxu0 %v851
    %1050 = vmatprep.subr.bf16.mxu0 %v855
    %1051 = vmatpush1.bf16.msra.mxu0 %v854
    %1052 = vmatprep.subr.bf16.mxu0 %v858
    %1053 = vmatpush1.bf16.msra.mxu0 %v857
    %1054 = vmatprep.subr.bf16.mxu0 %v861
    %1055 = vmatpush1.bf16.msra.mxu0 %v860
    %1056 = vmatprep.subr.bf16.mxu0 %v864
    %1057 = vmatpush1.bf16.msra.mxu0 %v863
    %1058 = vmatprep.subr.bf16.mxu0 %v867
    %1059 = vmatpush1.bf16.msra.mxu0 %v866
    %1060 = vmatprep.subr.bf16.mxu0 %v870
    %1061 = vmatpush1.bf16.msra.mxu0 %v869
    %1062 = vmatprep.subr.bf16.mxu0 %v873
    %1063 = vmatpush1.bf16.msra.mxu0 %v872
    %1064 = vmatprep.subr.bf16.mxu0 %v876
    %1065 = vmatpush1.bf16.msra.mxu0 %v875
    %1066 = vmatprep.subr.bf16.mxu0 %v879
    %1067 = vmatpush1.bf16.msra.mxu0 %v878
    %1068 = vmatprep.subr.bf16.mxu0 %v882
    %1069 = vmatpush1.bf16.msra.mxu0 %v881
    %1070 = vmatprep.subr.bf16.mxu0 %v885
    %1071 = vmatpush1.bf16.msra.mxu0 %v884
    %1072 = vmatprep.subr.bf16.mxu0 %v888
    %1073 = vmatpush1.bf16.msra.mxu0 %v887
    %1074 = vmatprep.subr.bf16.mxu0 %v891
    %1075 = vmatpush1.bf16.msra.mxu0 %v890
    %1076 = vmatprep.subr.bf16.mxu0 %v894
    %1077 = vmatpush1.bf16.msra.mxu0 %v893
    %1078 = vmatprep.mubr.bf16.mxu0 %v845
    %1079 = vmatmul.mubr.bf16.gmra.mrb[0].mxu0 %v844
    %v1080 = vpop.f32.mrb[0].mxu0
    %v1081 = vadd.f32 %v1000, %v1080
    %v1082 = vpop.f32.mrb[0].mxu0
    %v1083 = vadd.f32 %v1002, %v1082
    %v1084 = vpop.f32.mrb[0].mxu0
    %v1085 = vpop.f32.mrb[0].mxu0
    %1086 = vdwg.mxu0
    %1087 = vmatprep.subr.bf16.mxu0 %v897
    %1088 = vmatpush1.bf16.msra.mxu0 %v896
    %1089 = vmatprep.subr.bf16.mxu0 %v900
    %1090 = vmatpush1.bf16.msra.mxu0 %v899
    %1091 = vmatprep.subr.bf16.mxu0 %v903
    %1092 = vmatpush1.bf16.msra.mxu0 %v902
    %1093 = vmatprep.subr.bf16.mxu0 %v906
    %1094 = vmatpush1.bf16.msra.mxu0 %v905
    %1095 = vmatprep.subr.bf16.mxu0 %v909
    %1096 = vmatpush1.bf16.msra.mxu0 %v908
    %1097 = vmatprep.subr.bf16.mxu0 %v912
    %1098 = vmatpush1.bf16.msra.mxu0 %v911
    %1099 = vmatprep.subr.bf16.mxu0 %v915
    %1100 = vmatpush1.bf16.msra.mxu0 %v914
    %1101 = vmatprep.subr.bf16.mxu0 %v918
    %1102 = vmatpush1.bf16.msra.mxu0 %v917
    %1103 = vmatprep.subr.bf16.mxu0 %v921
    %1104 = vmatpush1.bf16.msra.mxu0 %v920
    %1105 = vmatprep.subr.bf16.mxu0 %v924
    %1106 = vmatpush1.bf16.msra.mxu0 %v923
    %1107 = vmatprep.subr.bf16.mxu0 %v927
    %1108 = vmatpush1.bf16.msra.mxu0 %v926
    %1109 = vmatprep.subr.bf16.mxu0 %v930
    %1110 = vmatpush1.bf16.msra.mxu0 %v929
    %1111 = vmatprep.subr.bf16.mxu0 %v933
    %1112 = vmatpush1.bf16.msra.mxu0 %v932
    %1113 = vmatprep.subr.bf16.mxu0 %v936
    %1114 = vmatpush1.bf16.msra.mxu0 %v935
    %1115 = vmatprep.subr.bf16.mxu0 %v939
    %1116 = vmatpush1.bf16.msra.mxu0 %v938
    %1117 = vmatprep.subr.bf16.mxu0 %v942
    %1118 = vmatpush1.bf16.msra.mxu0 %v941
    %1119 = vmatprep.mubr.bf16.mxu0 %v847
    %1120 = vmatmul.mubr.bf16.gmra.mrb[0].mxu0 %v846
    %v1121 = vpop.f32.mrb[0].mxu0
    %v1122 = vadd.f32 %v1081, %v1121
    %v1123 = vpop.f32.mrb[0].mxu0
    %v1124 = vadd.f32 %v1083, %v1123
    %v1125 = vpop.f32.mrb[0].mxu0
    %v1126 = vpop.f32.mrb[0].mxu0
    %1127 = vdwg.mxu0
    %1128 = vmatprep.subr.bf16.mxu0 0
    %1129 = vmatpush1.bf16.msra.mxu0 %v850
    %1130 = vmatprep.subr.bf16.mxu0 0
    %1131 = vmatpush1.bf16.msra.mxu0 %v853
    %1132 = vmatprep.subr.bf16.mxu0 0
    %1133 = vmatpush1.bf16.msra.mxu0 %v856
    %1134 = vmatprep.subr.bf16.mxu0 0
    %1135 = vmatpush1.bf16.msra.mxu0 %v859
    %1136 = vmatprep.subr.bf16.mxu0 0
    %1137 = vmatpush1.bf16.msra.mxu0 %v862
    %1138 = vmatprep.subr.bf16.mxu0 0
    %1139 = vmatpush1.bf16.msra.mxu0 %v865
    %1140 = vmatprep.subr.bf16.mxu0 0
    %1141 = vmatpush1.bf16.msra.mxu0 %v868
    %1142 = vmatprep.subr.bf16.mxu0 0
    %1143 = vmatpush1.bf16.msra.mxu0 %v871
    %1144 = vmatprep.subr.bf16.mxu0 0
    %1145 = vmatpush1.bf16.msra.mxu0 %v874
    %1146 = vmatprep.subr.bf16.mxu0 0
    %1147 = vmatpush1.bf16.msra.mxu0 %v877
    %1148 = vmatprep.subr.bf16.mxu0 0
    %1149 = vmatpush1.bf16.msra.mxu0 %v880
    %1150 = vmatprep.subr.bf16.mxu0 0
    %1151 = vmatpush1.bf16.msra.mxu0 %v883
    %1152 = vmatprep.subr.bf16.mxu0 0
    %1153 = vmatpush1.bf16.msra.mxu0 %v886
    %1154 = vmatprep.subr.bf16.mxu0 0
    %1155 = vmatpush1.bf16.msra.mxu0 %v889
    %1156 = vmatprep.subr.bf16.mxu0 0
    %1157 = vmatpush1.bf16.msra.mxu0 %v892
    %1158 = vmatprep.subr.bf16.mxu0 0
    %1159 = vmatpush1.bf16.msra.mxu0 %v895
    %1160 = vmatprep.mubr.bf16.mxu0 %v845
    %1161 = vmatmul.mubr.bf16.gmra.mrb[0].mxu0 %v844
    %v1162 = vpop.f32.mrb[0].mxu0
    %v1163 = vadd.f32 %v1041, %v1162
    %v1164 = vpop.f32.mrb[0].mxu0
    %v1165 = vpop.f32.mrb[0].mxu0
    %v1166 = vpop.f32.mrb[0].mxu0
    %1167 = vdwg.mxu0
    %1168 = vmatprep.subr.bf16.mxu0 0
    %1169 = vmatpush1.bf16.msra.mxu0 %v898
    %1170 = vmatprep.subr.bf16.mxu0 0
    %1171 = vmatpush1.bf16.msra.mxu0 %v901
    %1172 = vmatprep.subr.bf16.mxu0 0
    %1173 = vmatpush1.bf16.msra.mxu0 %v904
    %1174 = vmatprep.subr.bf16.mxu0 0
    %1175 = vmatpush1.bf16.msra.mxu0 %v907
    %1176 = vmatprep.subr.bf16.mxu0 0
    %1177 = vmatpush1.bf16.msra.mxu0 %v910
    %1178 = vmatprep.subr.bf16.mxu0 0
    %1179 = vmatpush1.bf16.msra.mxu0 %v913
    %1180 = vmatprep.subr.bf16.mxu0 0
    %1181 = vmatpush1.bf16.msra.mxu0 %v916
    %1182 = vmatprep.subr.bf16.mxu0 0
    %1183 = vmatpush1.bf16.msra.mxu0 %v919
    %1184 = vmatprep.subr.bf16.mxu0 0
    %1185 = vmatpush1.bf16.msra.mxu0 %v922
    %1186 = vmatprep.subr.bf16.mxu0 0
    %1187 = vmatpush1.bf16.msra.mxu0 %v925
    %1188 = vmatprep.subr.bf16.mxu0 0
    %1189 = vmatpush1.bf16.msra.mxu0 %v928
    %1190 = vmatprep.subr.bf16.mxu0 0
    %1191 = vmatpush1.bf16.msra.mxu0 %v931
    %1192 = vmatprep.subr.bf16.mxu0 0
    %1193 = vmatpush1.bf16.msra.mxu0 %v934
    %1194 = vmatprep.subr.bf16.mxu0 0
    %1195 = vmatpush1.bf16.msra.mxu0 %v937
    %1196 = vmatprep.subr.bf16.mxu0 0
    %1197 = vmatpush1.bf16.msra.mxu0 %v940
    %1198 = vmatprep.subr.bf16.mxu0 0
    %1199 = vmatpush1.bf16.msra.mxu0 %v943
    %1200 = vmatprep.mubr.bf16.mxu0 %v847
    %1201 = vmatmul.mubr.bf16.gmra.mrb[0].mxu0 %v846
    %v1202 = vpop.f32.mrb[0].mxu0
    %v1203 = vadd.f32 %v1163, %v1202
    %v1204 = vpop.f32.mrb[0].mxu0
    %v1205 = vpop.f32.mrb[0].mxu0
    %v1206 = vpop.f32.mrb[0].mxu0
    %1207 = vdwg.mxu0
    %v1208 = vld [vmem:[%s6] sm:$0x7]
    %v1210 = vlaneseq
    %v1211 = vshrl.u32 %v1210, 7
    %v1212 = vsub.s32 0, %v1211
    %v1213 = vrot.slane %v1208, %v1212
    %v1214 = vlaneseq
    %v1215 = vshrl.u32 %v1214, 7
    %v1216 = vsub.s32 1, %v1215
    %v1217 = vrot.slane %v1208, %v1216
    %v1218 = vlaneseq
    %v1219 = vshrl.u32 %v1218, 7
    %v1220 = vsub.s32 2, %v1219
    %v1221 = vrot.slane %v1208, %v1220
    %v1225 = vadd.f32 %v1122, %v1213
    %v1226 = vadd.f32 %v1124, %v1217
    %v1227 = vadd.f32 %v1203, %v1221
    %v1228 = vmax.f32 %v1225, 0.0
    %v1229 = vmax.f32 %v1226, 0.0
    %v1230 = vmax.f32 %v1227, 0.0
    %v1231 = vld [vmem:[%s7] sm:$0xff]
    %v1232 = vld [vmem:[%s7 + $0x8] sm:$0xff]
    %v1233 = vld [vmem:[%s7 + $0x10] sm:$0xff]
    %v1234 = vld [vmem:[%s7 + $0x18] sm:$0xff]
    %v1235 = vld [vmem:[%s7 + $0x20] sm:$0xff]
    %v1236 = vld [vmem:[%s7 + $0x28] sm:$0xff]
    %v1237 = vld [vmem:[%s7 + $0x30] sm:$0xff]
    %v1238 = vld [vmem:[%s7 + $0x38] sm:$0xff]
    %v1239 = vld [vmem:[%s7 + $0x40] sm:$0xff]
    %v1240 = vld [vmem:[%s7 + $0x48] sm:$0xff]
    %v1241 = vld [vmem:[%s7 + $0x50] sm:$0xff]
    %v1242 = vld [vmem:[%s7 + $0x58] sm:$0xff]
    %v1243 = vld [vmem:[%s7 + $0x60] sm:$0xff]
    %v1244 = vld [vmem:[%s7 + $0x68] sm:$0xff]
    %v1245 = vld [vmem:[%s7 + $0x70] sm:$0xff]
    %v1246 = vld [vmem:[%s7 + $0x78] sm:$0xff]
    %v1247 = vld [vmem:[%s7 + $0x80] sm:$0xff]
    %v1248 = vld [vmem:[%s7 + $0x88] sm:$0xff]
    %v1249 = vld [vmem:[%s7 + $0x90] sm:$0xff]
    %v1250 = vld [vmem:[%s7 + $0x98] sm:$0xff]
    %v1251 = vld [vmem:[%s7 + $0xa0] sm:$0xff]
    %v1252 = vld [vmem:[%s7 + $0xa8] sm:$0xff]
    %v1253 = vld [vmem:[%s7 + $0xb0] sm:$0xff]
    %v1254 = vld [vmem:[%s7 + $0xb8] sm:$0xff]
    %v1255 = vld [vmem:[%s7 + $0xc0] sm:$0xff]
    %v1256 = vld [vmem:[%s7 + $0xc8] sm:$0xff]
    %v1257 = vld [vmem:[%s7 + $0xd0] sm:$0xff]
    %v1258 = vld [vmem:[%s7 + $0xd8] sm:$0xff]
    %v1259 = vld [vmem:[%s7 + $0xe0] sm:$0xff]
    %v1260 = vld [vmem:[%s7 + $0xe8] sm:$0xff]
    %v1261 = vld [vmem:[%s7 + $0xf0] sm:$0xff]
    %v1262 = vld [vmem:[%s7 + $0xf8] sm:$0xff]
    %v1263 = vld [vmem:[%s7 + $0x100] sm:$0xff]
    %v1264 = vld [vmem:[%s7 + $0x108] sm:$0xff]
    %v1265 = vld [vmem:[%s7 + $0x110] sm:$0xff]
    %v1266 = vld [vmem:[%s7 + $0x118] sm:$0xff]
    %v1267 = vld [vmem:[%s7 + $0x120] sm:$0xff]
    %v1268 = vld [vmem:[%s7 + $0x128] sm:$0xff]
    %v1269 = vld [vmem:[%s7 + $0x130] sm:$0xff]
    %v1270 = vld [vmem:[%s7 + $0x138] sm:$0xff]
    %v1271 = vld [vmem:[%s7 + $0x140] sm:$0xff]
    %v1272 = vld [vmem:[%s7 + $0x148] sm:$0xff]
    %v1273 = vld [vmem:[%s7 + $0x150] sm:$0xff]
    %v1274 = vld [vmem:[%s7 + $0x158] sm:$0xff]
    %v1275 = vld [vmem:[%s7 + $0x160] sm:$0xff]
    %v1276 = vld [vmem:[%s7 + $0x168] sm:$0xff]
    %v1277 = vld [vmem:[%s7 + $0x170] sm:$0xff]
    %v1278 = vld [vmem:[%s7 + $0x178] sm:$0xff]
    %v1279 = vpack.c.bf16 %v1228, %v1228
    %v1280 = vpack.c.bf16 %v1229, %v1229
    %v1281 = vpack.c.bf16 %v1230, %v1230
    %v1282 = vpack.c.bf16 %v1232, %v1231
    %v1283 = vpack.c.bf16 %v1234, %v1233
    %v1284 = vpack.c.bf16 %v1236, %v1235
    %v1285 = vpack.c.bf16 %v1238, %v1237
    %v1286 = vpack.c.bf16 %v1240, %v1239
    %v1287 = vpack.c.bf16 %v1242, %v1241
    %v1288 = vpack.c.bf16 %v1244, %v1243
    %v1289 = vpack.c.bf16 %v1246, %v1245
    %v1290 = vpack.c.bf16 %v1248, %v1247
    %v1291 = vpack.c.bf16 %v1250, %v1249
    %v1292 = vpack.c.bf16 %v1252, %v1251
    %v1293 = vpack.c.bf16 %v1254, %v1253
    %v1294 = vpack.c.bf16 %v1256, %v1255
    %v1295 = vpack.c.bf16 %v1258, %v1257
    %v1296 = vpack.c.bf16 %v1260, %v1259
    %v1297 = vpack.c.bf16 %v1262, %v1261
    %v1298 = vpack.c.bf16 %v1264, %v1263
    %v1299 = vpack.c.bf16 %v1266, %v1265
    %v1300 = vpack.c.bf16 %v1268, %v1267
    %v1301 = vpack.c.bf16 %v1270, %v1269
    %v1302 = vpack.c.bf16 %v1272, %v1271
    %v1303 = vpack.c.bf16 %v1274, %v1273
    %v1304 = vpack.c.bf16 %v1276, %v1275
    %v1305 = vpack.c.bf16 %v1278, %v1277
    %v1306 = vld [vmem:[%s8] sm:$0x1]
    %v1308 = vlaneseq
    %v1309 = vshrl.u32 %v1308, 7
    %v1310 = vsub.s32 0, %v1309
    %v1311 = vrot.slane %v1306, %v1310
    %1313 = vmatprep.subr.bf16.mxu0 0
    %1314 = vmatpush1.bf16.msra.mxu0 %v1282
    %1315 = vmatprep.subr.bf16.mxu0 0
    %1316 = vmatpush1.bf16.msra.mxu0 %v1283
    %1317 = vmatprep.subr.bf16.mxu0 0
    %1318 = vmatpush1.bf16.msra.mxu0 %v1284
    %1319 = vmatprep.subr.bf16.mxu0 0
    %1320 = vmatpush1.bf16.msra.mxu0 %v1285
    %1321 = vmatprep.subr.bf16.mxu0 0
    %1322 = vmatpush1.bf16.msra.mxu0 %v1286
    %1323 = vmatprep.subr.bf16.mxu0 0
    %1324 = vmatpush1.bf16.msra.mxu0 %v1287
    %1325 = vmatprep.subr.bf16.mxu0 0
    %1326 = vmatpush1.bf16.msra.mxu0 %v1288
    %1327 = vmatprep.subr.bf16.mxu0 0
    %1328 = vmatpush1.bf16.msra.mxu0 %v1289
    %1329 = vmatprep.subr.bf16.mxu0 0
    %1330 = vmatpush1.bf16.msra.mxu0 %v1290
    %1331 = vmatprep.subr.bf16.mxu0 0
    %1332 = vmatpush1.bf16.msra.mxu0 %v1291
    %1333 = vmatprep.subr.bf16.mxu0 0
    %1334 = vmatpush1.bf16.msra.mxu0 %v1292
    %1335 = vmatprep.subr.bf16.mxu0 0
    %1336 = vmatpush1.bf16.msra.mxu0 %v1293
    %1337 = vmatprep.subr.bf16.mxu0 0
    %1338 = vmatpush1.bf16.msra.mxu0 %v1294
    %1339 = vmatprep.subr.bf16.mxu0 0
    %1340 = vmatpush1.bf16.msra.mxu0 %v1295
    %1341 = vmatprep.subr.bf16.mxu0 0
    %1342 = vmatpush1.bf16.msra.mxu0 %v1296
    %1343 = vmatprep.subr.bf16.mxu0 0
    %1344 = vmatpush1.bf16.msra.mxu0 %v1297
    %1345 = vmatprep.mubr.bf16.mxu0 %v1280
    %1346 = vmatmul.mubr.bf16.gmra.mrb[0].mxu0 %v1279
    %v1347 = vpop.f32.mrb[0].mxu0
    %v1348 = vadd.f32 %v1311, %v1347
    %v1349 = vpop.f32.mrb[0].mxu0
    %v1350 = vpop.f32.mrb[0].mxu0
    %v1351 = vpop.f32.mrb[0].mxu0
    %1352 = vdwg.mxu0
    %1353 = vmatprep.subr.bf16.mxu0 0
    %1354 = vmatpush1.bf16.msra.mxu0 %v1298
    %1355 = vmatprep.subr.bf16.mxu0 0
    %1356 = vmatpush1.bf16.msra.mxu0 %v1299
    %1357 = vmatprep.subr.bf16.mxu0 0
    %1358 = vmatpush1.bf16.msra.mxu0 %v1300
    %1359 = vmatprep.subr.bf16.mxu0 0
    %1360 = vmatpush1.bf16.msra.mxu0 %v1301
    %1361 = vmatprep.subr.bf16.mxu0 0
    %1362 = vmatpush1.bf16.msra.mxu0 %v1302
    %1363 = vmatprep.subr.bf16.mxu0 0
    %1364 = vmatpush1.bf16.msra.mxu0 %v1303
    %1365 = vmatprep.subr.bf16.mxu0 0
    %1366 = vmatpush1.bf16.msra.mxu0 %v1304
    %1367 = vmatprep.subr.bf16.mxu0 0
    %1368 = vmatpush1.bf16.msra.mxu0 %v1305
    %1369 = vmatprep.subr.bf16.mxu0 0
    %1370 = vmatpush1.bf16.msra.mxu0 0
    %1371 = vmatprep.subr.bf16.mxu0 0
    %1372 = vmatpush1.bf16.msra.mxu0 0
    %1373 = vmatprep.subr.bf16.mxu0 0
    %1374 = vmatpush1.bf16.msra.mxu0 0
    %1375 = vmatprep.subr.bf16.mxu0 0
    %1376 = vmatpush1.bf16.msra.mxu0 0
    %1377 = vmatprep.subr.bf16.mxu0 0
    %1378 = vmatpush1.bf16.msra.mxu0 0
    %1379 = vmatprep.subr.bf16.mxu0 0
    %1380 = vmatpush1.bf16.msra.mxu0 0
    %1381 = vmatprep.subr.bf16.mxu0 0
    %1382 = vmatpush1.bf16.msra.mxu0 0
    %1383 = vmatprep.subr.bf16.mxu0 0
    %1384 = vmatpush1.bf16.msra.mxu0 0
    %1385 = vmatprep.mubr.bf16.mxu0 0
    %1386 = vmatmul.mubr.bf16.gmra.mrb[0].mxu0 %v1281
    %v1387 = vpop.f32.mrb[0].mxu0
    %v1388 = vadd.f32 %v1348, %v1387
    %v1389 = vpop.f32.mrb[0].mxu0
    %v1390 = vpop.f32.mrb[0].mxu0
    %v1391 = vpop.f32.mrb[0].mxu0
    %1392 = vdwg.mxu0
    %1393 = vst.msk [vmem:[#allocation5] sm:$0xff] %vm211, %v1388
    // Predicated region
    $region42: #{tpu_custom_call.1} parent=1 // pred_check
      _
    $region43: #{tpu_custom_call.1} parent=1 // pred_check_branch
      %1395 = sbr.rel (0) target = $region45
    $region44: #{tpu_custom_call.1} parent=1 // pred_region
      %s1397 = ssub.s32 128, 128
      %1398 = vsyncadd [#allocation4], %s1397
      %s1400 = sshll.u32 [#allocation5], 4
      %s1401 = int_to_ptr.vmem [resolvable:$true] %s1400
      %1403 = dma.vmem_to_hbm [thread:$0]  %s1401, 128, %s9, [#allocation4]
    $region45: #{tpu_custom_call.1} parent=1 // pred_fallthru
      _
    // Predicated region
    $region46: #{tpu_custom_call.1} parent=1 // pred_check
      _
    $region47: #{tpu_custom_call.1} parent=1 // pred_check_branch
      %1405 = sbr.rel (0) target = $region49
    $region48: #{tpu_custom_call.1} parent=1 // pred_region
      %1406 = dma.done [#allocation4], 128
    $region49: #{tpu_custom_call.1} parent=1 // pred_fallthru
      _
    %1407 = vsyncpa [#allocation3], 1
    %1408 = vsyncpa [#allocation4], 1

</llo_original>
